<compile_context>
chip_gen: v5e
topology: v5e:2x2
jax: 0.10.0
libtpu: 0.0.40
codegen_flags: <defaults>
</compile_context>

<pallas_src>
import jax
import jax.numpy as jnp
from jax.experimental import pallas as pl
from jax.experimental.pallas import tpu as pltpu


def _conv_im2col_relu(x, w_ref, b_ref, f, out_dtype):
    """x: [TN, H, Cin]; w_ref: [f*Cin, Cout]; b_ref: [1, Cout] -> [TN, H-f+1, Cout]."""
    tn, h, cin = x.shape
    h_out = h - f + 1
    cout = w_ref.shape[1]
    # im2col: stack the f sliding-window taps along the channel (lane) axis,
    # fold (batch, row) into the matmul M dimension -> one MXU matmul per layer.
    cols = jnp.concatenate([x[:, k:k + h_out, :] for k in range(f)], axis=-1)
    cols2d = cols.reshape(tn * h_out, f * cin)
    y = jnp.dot(cols2d, w_ref[...], preferred_element_type=jnp.float32)
    y = jnp.maximum(y + b_ref[...], 0.0)            # bias + ReLU in f32
    return y.astype(out_dtype).reshape(tn, h_out, cout)


def _cnn_seq_kernel(x_ref, w1_ref, b1_ref, w2_ref, b2_ref, w3_ref, b3_ref,
                    wf1_ref, bf1_ref, wf2_ref, bf2_ref, out_ref):
    x = x_ref[...]                                   # [TN, H0, Cin]
    cin = x.shape[2]
    f = w1_ref.shape[0] // cin                       # taps from im2col weight
    dt = x.dtype

    h1 = _conv_im2col_relu(x, w1_ref, b1_ref, f, dt)     # [TN, H1, 4C]
    h2 = _conv_im2col_relu(h1, w2_ref, b2_ref, f, dt)    # [TN, H2, 16C]
    h3 = _conv_im2col_relu(h2, w3_ref, b3_ref, f, dt)    # [TN, H3, 32C]

    tn, h3n, c3 = h3.shape
    # Single (h, c) flatten for the whole batch block, then two lane-dense fc
    # matmuls written straight to out_ref (no per-sample rows / concatenate).
    # TODO(synk): a two-axis-contraction dot_general ('nhc,hco->no') would skip
    # this relayout but is not reliably lowered by Mosaic, so keep the flatten.
    flat = h3.reshape(tn, h3n * c3)
    z1 = jnp.dot(flat, wf1_ref[...], preferred_element_type=jnp.float32)
    z1 = jnp.maximum(z1 + bf1_ref[...], 0.0).astype(dt)
    z2 = jnp.dot(z1, wf2_ref[...], preferred_element_type=jnp.float32) + bf2_ref[...]
    out_ref[...] = z2.astype(out_ref.dtype)


def _round_up(x, m):
    return ((x + m - 1) // m) * m


def init_params(key, in_channel, height, width, filter_size, output_dim,
                padding1=0, padding2=0):
    """Deterministic params in PyTorch layout conventions."""
    C, f = in_channel, filter_size
    l1 = height + padding1 + padding2 - f + 1   # module's own size formula
    l2 = l1 - f + 1
    l3 = l2 - f + 1
    fc_in = 32 * C * l3

    def uniform(k, shape, fan_in):
        bound = 1.0 / (float(fan_in) ** 0.5)
        return jax.random.uniform(k, shape, jnp.float32, -bound, bound)

    ks = jax.random.split(key, 10)
    return {
        "conv1_w": uniform(ks[0], (4 * C, C, f, 1), C * f),
        "conv1_b": uniform(ks[1], (4 * C,), C * f),
        "conv2_w": uniform(ks[2], (16 * C, 4 * C, f, 1), 4 * C * f),
        "conv2_b": uniform(ks[3], (16 * C,), 4 * C * f),
        "conv3_w": uniform(ks[4], (32 * C, 16 * C, f, 1), 16 * C * f),
        "conv3_b": uniform(ks[5], (32 * C,), 16 * C * f),
        "fc1_w": uniform(ks[6], (15, fc_in), fc_in),
        "fc1_b": uniform(ks[7], (15,), fc_in),
        "fc2_w": uniform(ks[8], (output_dim, 15), 15),
        "fc2_b": uniform(ks[9], (output_dim,), 15),
    }


def cnn_seq_forward(x_nchw, params, padding1=0, padding2=0,
                    compute_dtype=jnp.float32, batch_block=None):
    """Equivalent of CNN_SEQ.forward. x_nchw: [N, C, H, W] (PyTorch layout)."""
    N = x_nchw.shape[0]
    # Conv2d spatial zero-padding (glue, plain JAX).
    x_p = jnp.pad(x_nchw,
                  ((0, 0), (0, 0), (padding1, padding1), (padding2, padding2)))
    assert x_p.shape[-1] == 1, "kernel specialised to effective width == 1"
    # TODO(synk): width > 1 (padding2 > 0) makes the module's own fc layer
    # shape-inconsistent, so it is not supported here.
    x_nhc = jnp.transpose(x_p[..., 0], (0, 2, 1)).astype(compute_dtype)  # [N,H,C]
    H0, C = x_nhc.shape[1], x_nhc.shape[2]

    def conv_w(w):  # PyTorch [Cout, Cin, f, 1] -> im2col [f*Cin, Cout]
        cout = w.shape[0]
        return (jnp.transpose(w[..., 0], (2, 1, 0))
                .reshape(-1, cout).astype(compute_dtype))

    w1 = conv_w(params["conv1_w"])
    b1 = params["conv1_b"].reshape(1, -1).astype(jnp.float32)
    w2 = conv_w(params["conv2_w"])
    b2 = params["conv2_b"].reshape(1, -1).astype(jnp.float32)
    w3 = conv_w(params["conv3_w"])
    b3 = params["conv3_b"].reshape(1, -1).astype(jnp.float32)

    f = params["conv1_w"].shape[2]
    H1 = H0 - (f - 1)
    H2 = H1 - (f - 1)
    H3 = H2 - (f - 1)
    C3 = params["conv3_w"].shape[0]
    hid = params["fc1_w"].shape[0]          # 15
    out_dim = params["fc2_w"].shape[0]
    hid_p = _round_up(hid, 128)             # lane-dense fc hidden
    out_p = _round_up(out_dim, 128)         # lane-dense output store

    # PyTorch flattens NCHW as (c, h); the kernel flattens as (h, c): permute
    # the fc1 weight rows accordingly; zero-pad hidden/output lanes.
    wf1 = (params["fc1_w"].reshape(hid, C3, H3)
           .transpose(2, 1, 0).reshape(H3 * C3, hid))
    wf1 = jnp.pad(wf1, ((0, 0), (0, hid_p - hid))).astype(compute_dtype)
    bf1 = jnp.pad(params["fc1_b"], (0, hid_p - hid)).reshape(1, -1).astype(jnp.float32)
    wf2 = jnp.pad(params["fc2_w"].T,
                  ((0, hid_p - hid), (0, out_p - out_dim))).astype(compute_dtype)
    bf2 = jnp.pad(params["fc2_b"], (0, out_p - out_dim)).reshape(1, -1).astype(jnp.float32)

    # Batch-only grid (the conv halo stays inside each block automatically).
    if batch_block is None:
        batch_block = min(N, 128)
    tn = min(batch_block, N)
    grid = (pl.cdiv(N, tn),)

    def whole(a):  # weights: whole-array VMEM block, resident across the grid
        return pl.BlockSpec(a.shape, lambda i: (0,) * a.ndim)

    # Advisory cost estimate so XLA schedules around the fused custom call.
    bpe = jnp.dtype(compute_dtype).itemsize
    cout1, cout2 = params["conv1_w"].shape[0], params["conv2_w"].shape[0]
    flops = 2 * N * (H1 * (f * C) * cout1
                     + H2 * (f * cout1) * cout2
                     + H3 * (f * cout2) * C3
                     + (H3 * C3) * hid_p
                     + hid_p * out_p)
    bytes_accessed = (x_nhc.size * bpe + N * out_p * 4
                      + (w1.size + w2.size + w3.size + wf1.size + wf2.size) * bpe
                      + (b1.size + b2.size + b3.size + bf1.size + bf2.size) * 4)
    cost = pl.CostEstimate(flops=flops, transcendentals=0,
                           bytes_accessed=bytes_accessed)

    out = pl.pallas_call(
        _cnn_seq_kernel,
        out_shape=jax.ShapeDtypeStruct((N, out_p), jnp.float32),
        grid=grid,
        in_specs=[pl.BlockSpec((tn, H0, C), lambda i: (i, 0, 0)),
                  whole(w1), whole(b1), whole(w2), whole(b2),
                  whole(w3), whole(b3),
                  whole(wf1), whole(bf1), whole(wf2), whole(bf2)],
        out_specs=pl.BlockSpec((tn, out_p), lambda i: (i, 0)),
        compiler_params=pltpu.CompilerParams(
            dimension_semantics=("parallel",)),
        cost_estimate=cost,
    )(x_nhc, w1, b1, w2, b2, w3, b3, wf1, bf1, wf2, bf2)
    return out[:, :out_dim]


def _reference_forward(x_nchw, params):
    """Pure-JAX reference mirroring the PyTorch module (padding = 0)."""
    def conv(x, w, b):
        y = jax.lax.conv_general_dilated(
            x, w, (1, 1), "VALID",
            dimension_numbers=("NCHW", "OIHW", "NCHW"))
        return jnp.maximum(y + b.reshape(1, -1, 1, 1), 0.0)
    h = conv(x_nchw, params["conv1_w"], params["conv1_b"])
    h = conv(h, params["conv2_w"], params["conv2_b"])
    h = conv(h, params["conv3_w"], params["conv3_b"])
    flat = h.reshape(h.shape[0], -1)                      # (c, h, w) order
    z1 = jnp.maximum(flat @ params["fc1_w"].T + params["fc1_b"], 0.0)
    return z1 @ params["fc2_w"].T + params["fc2_b"]


if __name__ == "__main__":
    # Small config consistent with the module's forward pass.
    in_channel, height, width = 4, 16, 1
    filter_size, output_dim = 3, 8
    padding1 = padding2 = 0
    batch = 2

    key = jax.random.PRNGKey(0)
    kx, kp = jax.random.split(key)
    x = jax.random.normal(kx, (batch, in_channel, height, width), jnp.float32)
    params = init_params(kp, in_channel, height, width, filter_size,
                         output_dim, padding1, padding2)

    preds = cnn_seq_forward(x, params, padding1, padding2)
    preds = jax.block_until_ready(preds)

    assert preds.shape == (batch, output_dim)
    assert preds.dtype == jnp.float32
    assert bool(jnp.all(jnp.isfinite(preds)))

    ref = _reference_forward(x, params)
    max_err = float(jnp.max(jnp.abs(preds - ref)))
    assert jnp.allclose(preds, ref, rtol=5e-2, atol=5e-2), max_err

    print("KERNEL_OK")
</pallas_src>

<mosaic_0001>
module attributes {stable_mosaic.version = 11 : i64} {
  func.func @_cnn_seq_kernel(%arg0: i32, %arg1: memref<2x16x4xf32, #tpu.memory_space<vmem>>, %arg2: memref<12x16xf32, #tpu.memory_space<vmem>>, %arg3: memref<1x16xf32, #tpu.memory_space<vmem>>, %arg4: memref<48x64xf32, #tpu.memory_space<vmem>>, %arg5: memref<1x64xf32, #tpu.memory_space<vmem>>, %arg6: memref<192x128xf32, #tpu.memory_space<vmem>>, %arg7: memref<1x128xf32, #tpu.memory_space<vmem>>, %arg8: memref<1280x128xf32, #tpu.memory_space<vmem>>, %arg9: memref<1x128xf32, #tpu.memory_space<vmem>>, %arg10: memref<128x128xf32, #tpu.memory_space<vmem>>, %arg11: memref<1x128xf32, #tpu.memory_space<vmem>>, %arg12: memref<2x128xf32, #tpu.memory_space<vmem>>) attributes {dimension_semantics = [#tpu.dimension_semantics<parallel>], iteration_bounds = array<i64: 1>, scalar_prefetch = 0 : i64, scratch_operands = 0 : i64, tpu.core_type = #tpu.core_type<tc>, window_params = [{transform_indices = @transform_0, window_bounds = array<i64: 2, 16, 4>}, {pipeline_mode = #tpu.pipeline_mode<synchronous>, transform_indices = @transform_1, window_bounds = array<i64: 12, 16>}, {pipeline_mode = #tpu.pipeline_mode<synchronous>, transform_indices = @transform_2, window_bounds = array<i64: 1, 16>}, {pipeline_mode = #tpu.pipeline_mode<synchronous>, transform_indices = @transform_3, window_bounds = array<i64: 48, 64>}, {pipeline_mode = #tpu.pipeline_mode<synchronous>, transform_indices = @transform_4, window_bounds = array<i64: 1, 64>}, {pipeline_mode = #tpu.pipeline_mode<synchronous>, transform_indices = @transform_5, window_bounds = array<i64: 192, 128>}, {pipeline_mode = #tpu.pipeline_mode<synchronous>, transform_indices = @transform_6, window_bounds = array<i64: 1, 128>}, {pipeline_mode = #tpu.pipeline_mode<synchronous>, transform_indices = @transform_7, window_bounds = array<i64: 1280, 128>}, {pipeline_mode = #tpu.pipeline_mode<synchronous>, transform_indices = @transform_8, window_bounds = array<i64: 1, 128>}, {pipeline_mode = #tpu.pipeline_mode<synchronous>, transform_indices = @transform_9, window_bounds = array<i64: 128, 128>}, {pipeline_mode = #tpu.pipeline_mode<synchronous>, transform_indices = @transform_10, window_bounds = array<i64: 1, 128>}, {transform_indices = @transform_11, window_bounds = array<i64: 2, 128>}]} {
    %c0 = arith.constant 0 : index
    %c0_0 = arith.constant 0 : index
    %c0_1 = arith.constant 0 : index
    %0 = vector.load %arg1[%c0, %c0_0, %c0_1] : memref<2x16x4xf32, #tpu.memory_space<vmem>>, vector<2x16x4xf32>
    %1 = vector.extract_strided_slice %0 {offsets = [0, 0, 0], sizes = [2, 14, 4], strides = [1, 1, 1]} : vector<2x16x4xf32> to vector<2x14x4xf32>
    %2 = vector.extract_strided_slice %0 {offsets = [0, 1, 0], sizes = [2, 14, 4], strides = [1, 1, 1]} : vector<2x16x4xf32> to vector<2x14x4xf32>
    %3 = vector.extract_strided_slice %0 {offsets = [0, 2, 0], sizes = [2, 14, 4], strides = [1, 1, 1]} : vector<2x16x4xf32> to vector<2x14x4xf32>
    %4 = tpu.concatenate %1, %2, %3 in 2 : vector<2x14x4xf32>, vector<2x14x4xf32>, vector<2x14x4xf32> -> vector<2x14x12xf32>
    %5 = vector.shape_cast %4 : vector<2x14x12xf32> to vector<28x12xf32>
    %c0_2 = arith.constant 0 : index
    %c0_3 = arith.constant 0 : index
    %6 = vector.load %arg2[%c0_2, %c0_3] : memref<12x16xf32, #tpu.memory_space<vmem>>, vector<12x16xf32>
    %cst = arith.constant dense<0.000000e+00> : vector<28x16xf32>
    %7 = tpu.matmul %5, %6, %cst {dimension_numbers = #tpu.dot_dimension_numbers<[1], [0], [0], [1], [0, 0, 1, 1], [], []>} : vector<28x12xf32>, vector<12x16xf32>, vector<28x16xf32> -> vector<28x16xf32>
    %c0_4 = arith.constant 0 : index
    %c0_5 = arith.constant 0 : index
    %8 = vector.load %arg3[%c0_4, %c0_5] : memref<1x16xf32, #tpu.memory_space<vmem>>, vector<1x16xf32>
    %9 = vector.broadcast %8 : vector<1x16xf32> to vector<28x16xf32>
    %10 = arith.addf %7, %9 : vector<28x16xf32>
    %cst_6 = arith.constant 0.000000e+00 : f32
    %11 = vector.broadcast %cst_6 : f32 to vector<28x16xf32>
    %12 = arith.maximumf %10, %11 : vector<28x16xf32>
    %13 = vector.shape_cast %12 : vector<28x16xf32> to vector<2x14x16xf32>
    %14 = vector.extract_strided_slice %13 {offsets = [0, 0, 0], sizes = [2, 12, 16], strides = [1, 1, 1]} : vector<2x14x16xf32> to vector<2x12x16xf32>
    %15 = vector.extract_strided_slice %13 {offsets = [0, 1, 0], sizes = [2, 12, 16], strides = [1, 1, 1]} : vector<2x14x16xf32> to vector<2x12x16xf32>
    %16 = vector.extract_strided_slice %13 {offsets = [0, 2, 0], sizes = [2, 12, 16], strides = [1, 1, 1]} : vector<2x14x16xf32> to vector<2x12x16xf32>
    %17 = tpu.concatenate %14, %15, %16 in 2 : vector<2x12x16xf32>, vector<2x12x16xf32>, vector<2x12x16xf32> -> vector<2x12x48xf32>
    %18 = vector.shape_cast %17 : vector<2x12x48xf32> to vector<24x48xf32>
    %c0_7 = arith.constant 0 : index
    %c0_8 = arith.constant 0 : index
    %19 = vector.load %arg4[%c0_7, %c0_8] : memref<48x64xf32, #tpu.memory_space<vmem>>, vector<48x64xf32>
    %cst_9 = arith.constant dense<0.000000e+00> : vector<24x64xf32>
    %20 = tpu.matmul %18, %19, %cst_9 {dimension_numbers = #tpu.dot_dimension_numbers<[1], [0], [0], [1], [0, 0, 1, 1], [], []>} : vector<24x48xf32>, vector<48x64xf32>, vector<24x64xf32> -> vector<24x64xf32>
    %c0_10 = arith.constant 0 : index
    %c0_11 = arith.constant 0 : index
    %21 = vector.load %arg5[%c0_10, %c0_11] : memref<1x64xf32, #tpu.memory_space<vmem>>, vector<1x64xf32>
    %22 = vector.broadcast %21 : vector<1x64xf32> to vector<24x64xf32>
    %23 = arith.addf %20, %22 : vector<24x64xf32>
    %cst_12 = arith.constant 0.000000e+00 : f32
    %24 = vector.broadcast %cst_12 : f32 to vector<24x64xf32>
    %25 = arith.maximumf %23, %24 : vector<24x64xf32>
    %26 = vector.shape_cast %25 : vector<24x64xf32> to vector<2x12x64xf32>
    %27 = vector.extract_strided_slice %26 {offsets = [0, 0, 0], sizes = [2, 10, 64], strides = [1, 1, 1]} : vector<2x12x64xf32> to vector<2x10x64xf32>
    %28 = vector.extract_strided_slice %26 {offsets = [0, 1, 0], sizes = [2, 10, 64], strides = [1, 1, 1]} : vector<2x12x64xf32> to vector<2x10x64xf32>
    %29 = vector.extract_strided_slice %26 {offsets = [0, 2, 0], sizes = [2, 10, 64], strides = [1, 1, 1]} : vector<2x12x64xf32> to vector<2x10x64xf32>
    %30 = tpu.concatenate %27, %28, %29 in 2 : vector<2x10x64xf32>, vector<2x10x64xf32>, vector<2x10x64xf32> -> vector<2x10x192xf32>
    %31 = vector.shape_cast %30 : vector<2x10x192xf32> to vector<20x192xf32>
    %c0_13 = arith.constant 0 : index
    %c0_14 = arith.constant 0 : index
    %32 = vector.load %arg6[%c0_13, %c0_14] : memref<192x128xf32, #tpu.memory_space<vmem>>, vector<192x128xf32>
    %cst_15 = arith.constant dense<0.000000e+00> : vector<20x128xf32>
    %33 = tpu.matmul %31, %32, %cst_15 {dimension_numbers = #tpu.dot_dimension_numbers<[1], [0], [0], [1], [0, 0, 1, 1], [], []>} : vector<20x192xf32>, vector<192x128xf32>, vector<20x128xf32> -> vector<20x128xf32>
    %c0_16 = arith.constant 0 : index
    %c0_17 = arith.constant 0 : index
    %34 = vector.load %arg7[%c0_16, %c0_17] : memref<1x128xf32, #tpu.memory_space<vmem>>, vector<1x128xf32>
    %35 = vector.broadcast %34 : vector<1x128xf32> to vector<20x128xf32>
    %36 = arith.addf %33, %35 : vector<20x128xf32>
    %cst_18 = arith.constant 0.000000e+00 : f32
    %37 = vector.broadcast %cst_18 : f32 to vector<20x128xf32>
    %38 = arith.maximumf %36, %37 : vector<20x128xf32>
    %39 = vector.shape_cast %38 : vector<20x128xf32> to vector<2x10x128xf32>
    %40 = vector.shape_cast %39 : vector<2x10x128xf32> to vector<2x1280xf32>
    %c0_19 = arith.constant 0 : index
    %c0_20 = arith.constant 0 : index
    %41 = vector.load %arg8[%c0_19, %c0_20] : memref<1280x128xf32, #tpu.memory_space<vmem>>, vector<1280x128xf32>
    %cst_21 = arith.constant dense<0.000000e+00> : vector<2x128xf32>
    %42 = tpu.matmul %40, %41, %cst_21 {dimension_numbers = #tpu.dot_dimension_numbers<[1], [0], [0], [1], [0, 0, 1, 1], [], []>} : vector<2x1280xf32>, vector<1280x128xf32>, vector<2x128xf32> -> vector<2x128xf32>
    %c0_22 = arith.constant 0 : index
    %c0_23 = arith.constant 0 : index
    %43 = vector.load %arg9[%c0_22, %c0_23] : memref<1x128xf32, #tpu.memory_space<vmem>>, vector<1x128xf32>
    %44 = vector.broadcast %43 : vector<1x128xf32> to vector<2x128xf32>
    %45 = arith.addf %42, %44 : vector<2x128xf32>
    %cst_24 = arith.constant 0.000000e+00 : f32
    %46 = vector.broadcast %cst_24 : f32 to vector<2x128xf32>
    %47 = arith.maximumf %45, %46 : vector<2x128xf32>
    %c0_25 = arith.constant 0 : index
    %c0_26 = arith.constant 0 : index
    %48 = vector.load %arg10[%c0_25, %c0_26] : memref<128x128xf32, #tpu.memory_space<vmem>>, vector<128x128xf32>
    %cst_27 = arith.constant dense<0.000000e+00> : vector<2x128xf32>
    %49 = tpu.matmul %47, %48, %cst_27 {dimension_numbers = #tpu.dot_dimension_numbers<[1], [0], [0], [1], [0, 0, 1, 1], [], []>} : vector<2x128xf32>, vector<128x128xf32>, vector<2x128xf32> -> vector<2x128xf32>
    %c0_28 = arith.constant 0 : index
    %c0_29 = arith.constant 0 : index
    %50 = vector.load %arg11[%c0_28, %c0_29] : memref<1x128xf32, #tpu.memory_space<vmem>>, vector<1x128xf32>
    %51 = vector.broadcast %50 : vector<1x128xf32> to vector<2x128xf32>
    %52 = arith.addf %49, %51 : vector<2x128xf32>
    %c0_30 = arith.constant 0 : index
    %c0_31 = arith.constant 0 : index
    %53 = vector.load %arg12[%c0_30, %c0_31] : memref<2x128xf32, #tpu.memory_space<vmem>>, vector<2x128xf32>
    tpu.vector_store %arg12[%c0_30, %c0_31], %52 {strides = array<i32>} : memref<2x128xf32, #tpu.memory_space<vmem>>, vector<2x128xf32>,
    return
  }
  func.func @transform_0(%arg0: i32) -> (i32, i32, i32) {
    %c0_i32 = arith.constant 0 : i32
    %c0_i32_0 = arith.constant 0 : i32
    %c0_i32_1 = arith.constant 0 : i32
    return %arg0, %c0_i32, %c0_i32_0 : i32, i32, i32
  }
  func.func @transform_1(%arg0: i32) -> (i32, i32) {
    %c0_i32 = arith.constant 0 : i32
    %c0_i32_0 = arith.constant 0 : i32
    %c0_i32_1 = arith.constant 0 : i32
    return %c0_i32, %c0_i32_0 : i32, i32
  }
  func.func @transform_2(%arg0: i32) -> (i32, i32) {
    %c0_i32 = arith.constant 0 : i32
    %c0_i32_0 = arith.constant 0 : i32
    %c0_i32_1 = arith.constant 0 : i32
    return %c0_i32, %c0_i32_0 : i32, i32
  }
  func.func @transform_3(%arg0: i32) -> (i32, i32) {
    %c0_i32 = arith.constant 0 : i32
    %c0_i32_0 = arith.constant 0 : i32
    %c0_i32_1 = arith.constant 0 : i32
    return %c0_i32, %c0_i32_0 : i32, i32
  }
  func.func @transform_4(%arg0: i32) -> (i32, i32) {
    %c0_i32 = arith.constant 0 : i32
    %c0_i32_0 = arith.constant 0 : i32
    %c0_i32_1 = arith.constant 0 : i32
    return %c0_i32, %c0_i32_0 : i32, i32
  }
  func.func @transform_5(%arg0: i32) -> (i32, i32) {
    %c0_i32 = arith.constant 0 : i32
    %c0_i32_0 = arith.constant 0 : i32
    %c0_i32_1 = arith.constant 0 : i32
    return %c0_i32, %c0_i32_0 : i32, i32
  }
  func.func @transform_6(%arg0: i32) -> (i32, i32) {
    %c0_i32 = arith.constant 0 : i32
    %c0_i32_0 = arith.constant 0 : i32
    %c0_i32_1 = arith.constant 0 : i32
    return %c0_i32, %c0_i32_0 : i32, i32
  }
  func.func @transform_7(%arg0: i32) -> (i32, i32) {
    %c0_i32 = arith.constant 0 : i32
    %c0_i32_0 = arith.constant 0 : i32
    %c0_i32_1 = arith.constant 0 : i32
    return %c0_i32, %c0_i32_0 : i32, i32
  }
  func.func @transform_8(%arg0: i32) -> (i32, i32) {
    %c0_i32 = arith.constant 0 : i32
    %c0_i32_0 = arith.constant 0 : i32
    %c0_i32_1 = arith.constant 0 : i32
    return %c0_i32, %c0_i32_0 : i32, i32
  }
  func.func @transform_9(%arg0: i32) -> (i32, i32) {
    %c0_i32 = arith.constant 0 : i32
    %c0_i32_0 = arith.constant 0 : i32
    %c0_i32_1 = arith.constant 0 : i32
    return %c0_i32, %c0_i32_0 : i32, i32
  }
  func.func @transform_10(%arg0: i32) -> (i32, i32) {
    %c0_i32 = arith.constant 0 : i32
    %c0_i32_0 = arith.constant 0 : i32
    %c0_i32_1 = arith.constant 0 : i32
    return %c0_i32, %c0_i32_0 : i32, i32
  }
  func.func @transform_11(%arg0: i32) -> (i32, i32) {
    %c0_i32 = arith.constant 0 : i32
    %c0_i32_0 = arith.constant 0 : i32
    return %arg0, %c0_i32 : i32, i32
  }
}

</mosaic_0001>

<llo_original>
// kernel: tpu_custom_call.1
$region0: #{tpu_custom_call.1}
  #allocation0 [shape = 'u32[]', space=smem, size = 0x4, offset = 0x4, fixed_abs, tag = 'smem constant byte address 0x4 - core index']
  #allocation1 [shape = 'u32[72,128]{1,0:T(1,128)}', space=vmem, size = 0x9000, scoped, tag = 'internal scratch']
  %s0 = inlined_call_operand.vmem [shape: f32[2,16,4], index: 0, kind: input, shape index: {}]
  %s1 = inlined_call_operand.vmem [shape: f32[12,16], index: 1, kind: input, shape index: {}]
  %s2 = inlined_call_operand.vmem [shape: f32[1,16], index: 2, kind: input, shape index: {}]
  %s3 = inlined_call_operand.hbm [shape: f32[48,64], index: 3, kind: input, shape index: {}]
  %s4 = inlined_call_operand.vmem [shape: f32[1,64], index: 4, kind: input, shape index: {}]
  %s5 = inlined_call_operand.hbm [shape: f32[192,128], index: 5, kind: input, shape index: {}]
  %s6 = inlined_call_operand.vmem [shape: f32[1,128], index: 6, kind: input, shape index: {}]
  %s7 = inlined_call_operand.hbm [shape: f32[1280,128], index: 7, kind: input, shape index: {}]
  %s8 = inlined_call_operand.vmem [shape: f32[1,128], index: 8, kind: input, shape index: {}]
  %s9 = inlined_call_operand.hbm [shape: f32[128,128], index: 9, kind: input, shape index: {}]
  %s10 = inlined_call_operand.vmem [shape: f32[1,128], index: 10, kind: input, shape index: {}]
  %s11 = inlined_call_operand.hbm [shape: f32[2,128], index: 11, kind: output, shape index: {}]
  %s12 = sld [smem:[#allocation0]]
  $region70: #{tpu_custom_call.1} parent=0
    _
  %s14 = ssub.s32 1, %s12
  %s15 = scalar_select 0, %s14, %s12
  $region1: #{tpu_custom_call.1} parent=0
    #allocation2 [shape = 'u8[24576]{0}', space=vmem, size = 0x6000, scoped, tag = 'input window, operand 3, single buffered']
    #allocation3 [shape = 's32[1]{0}', space=sflag, size = 0x4, scoped, tag = 'scoped memory for tpu_custom_call.1']
    #allocation4 [shape = 's32[1]{0}', space=sflag, size = 0x4, scoped, tag = 'scoped memory for tpu_custom_call.1']
    #allocation5 [shape = 'u8[98304]{0}', space=vmem, size = 0x18000, scoped, tag = 'input window, operand 5, single buffered']
    #allocation6 [shape = 's32[1]{0}', space=sflag, size = 0x4, scoped, tag = 'scoped memory for tpu_custom_call.1']
    #allocation7 [shape = 'u8[655360]{0}', space=vmem, size = 0xa0000, scoped, tag = 'input window, operand 7, single buffered']
    #allocation8 [shape = 'u8[65536]{0}', space=vmem, size = 0x10000, scoped, tag = 'input window, operand 9, single buffered']
    #allocation9 [shape = 's32[1]{0}', space=sflag, size = 0x4, scoped, tag = 'scoped memory for tpu_custom_call.1']
    #allocation10 [shape = 'u8[1024]{0}', space=vmem, size = 0x400, scoped, tag = 'output window, operand 0, single buffered']
    %16 = vsyncpa [#allocation3], 0
    %17 = vsyncpa [#allocation6], 0
    %18 = vsyncpa [#allocation9], 0
    %19 = vsyncpa [#allocation4], 0
    // Predicated region
    $region2: #{tpu_custom_call.1} parent=1 // pred_check
      _
    $region3: #{tpu_custom_call.1} parent=1 // pred_check_branch
      %21 = sbr.rel (0) target = $region5
    $region4: #{tpu_custom_call.1} parent=1 // pred_region
      _
    $region5: #{tpu_custom_call.1} parent=1 // pred_fallthru
      _
    // Predicated region
    $region6: #{tpu_custom_call.1} parent=1 // pred_check
      _
    $region7: #{tpu_custom_call.1} parent=1 // pred_check_branch
      %23 = sbr.rel (0) target = $region9
    $region8: #{tpu_custom_call.1} parent=1 // pred_region
      _
    $region9: #{tpu_custom_call.1} parent=1 // pred_fallthru
      _
    // Predicated region
    $region10: #{tpu_custom_call.1} parent=1 // pred_check
      _
    $region11: #{tpu_custom_call.1} parent=1 // pred_check_branch
      %25 = sbr.rel (0) target = $region13
    $region12: #{tpu_custom_call.1} parent=1 // pred_region
      _
    $region13: #{tpu_custom_call.1} parent=1 // pred_fallthru
      _
    // Predicated region
    $region14: #{tpu_custom_call.1} parent=1 // pred_check
      _
    $region15: #{tpu_custom_call.1} parent=1 // pred_check_branch
      %27 = sbr.rel (0) target = $region17
    $region16: #{tpu_custom_call.1} parent=1 // pred_region
      %29 = vsyncadd [#allocation3], 0
      %s30 = sshll.u32 %s3, 4
      %s31 = int_to_ptr.hbm [resolvable:$true] %s30
      %s32 = sshll.u32 [#allocation2], 4
      %s33 = int_to_ptr.vmem [resolvable:$true] %s32
      %38 = dma.hbm_to_vmem [thread:$0]  %s31, 768, %s33, [#allocation3], 128, 128, 8
    $region17: #{tpu_custom_call.1} parent=1 // pred_fallthru
      _
    // Predicated region
    $region18: #{tpu_custom_call.1} parent=1 // pred_check
      _
    $region19: #{tpu_custom_call.1} parent=1 // pred_check_branch
      %40 = sbr.rel (0) target = $region21
    $region20: #{tpu_custom_call.1} parent=1 // pred_region
      _
    $region21: #{tpu_custom_call.1} parent=1 // pred_fallthru
      _
    // Predicated region
    $region22: #{tpu_custom_call.1} parent=1 // pred_check
      _
    $region23: #{tpu_custom_call.1} parent=1 // pred_check_branch
      %42 = sbr.rel (0) target = $region25
    $region24: #{tpu_custom_call.1} parent=1 // pred_region
      %44 = vsyncadd [#allocation6], 0
      %s45 = sshll.u32 %s5, 4
      %s46 = int_to_ptr.hbm [resolvable:$true] %s45
      %s47 = sshll.u32 [#allocation5], 4
      %s48 = int_to_ptr.vmem [resolvable:$true] %s47
      %53 = dma.hbm_to_vmem [thread:$0]  %s46, 3072, %s48, [#allocation6], 128, 128, 8
    $region25: #{tpu_custom_call.1} parent=1 // pred_fallthru
      _
    // Predicated region
    $region26: #{tpu_custom_call.1} parent=1 // pred_check
      _
    $region27: #{tpu_custom_call.1} parent=1 // pred_check_branch
      %55 = sbr.rel (0) target = $region29
    $region28: #{tpu_custom_call.1} parent=1 // pred_region
      _
    $region29: #{tpu_custom_call.1} parent=1 // pred_fallthru
      _
    // Predicated region
    $region30: #{tpu_custom_call.1} parent=1 // pred_check
      _
    $region31: #{tpu_custom_call.1} parent=1 // pred_check_branch
      %57 = sbr.rel (0) target = $region33
    $region32: #{tpu_custom_call.1} parent=1 // pred_region
      %59 = vsyncadd [#allocation6], 0
      %s60 = sshll.u32 %s7, 4
      %s61 = int_to_ptr.hbm [resolvable:$true] %s60
      %s62 = sshll.u32 [#allocation7], 4
      %s63 = int_to_ptr.vmem [resolvable:$true] %s62
      %68 = dma.hbm_to_vmem [thread:$0]  %s61, 20480, %s63, [#allocation6], 128, 128, 8
    $region33: #{tpu_custom_call.1} parent=1 // pred_fallthru
      _
    // Predicated region
    $region34: #{tpu_custom_call.1} parent=1 // pred_check
      _
    $region35: #{tpu_custom_call.1} parent=1 // pred_check_branch
      %70 = sbr.rel (0) target = $region37
    $region36: #{tpu_custom_call.1} parent=1 // pred_region
      _
    $region37: #{tpu_custom_call.1} parent=1 // pred_fallthru
      _
    // Predicated region
    $region38: #{tpu_custom_call.1} parent=1 // pred_check
      _
    $region39: #{tpu_custom_call.1} parent=1 // pred_check_branch
      %72 = sbr.rel (0) target = $region41
    $region40: #{tpu_custom_call.1} parent=1 // pred_region
      %74 = vsyncadd [#allocation9], 0
      %s75 = sshll.u32 %s9, 4
      %s76 = int_to_ptr.hbm [resolvable:$true] %s75
      %s77 = sshll.u32 [#allocation8], 4
      %s78 = int_to_ptr.vmem [resolvable:$true] %s77
      %83 = dma.hbm_to_vmem [thread:$0]  %s76, 2048, %s78, [#allocation9], 128, 128, 8
    $region41: #{tpu_custom_call.1} parent=1 // pred_fallthru
      _
    // Predicated region
    $region42: #{tpu_custom_call.1} parent=1 // pred_check
      _
    $region43: #{tpu_custom_call.1} parent=1 // pred_check_branch
      %85 = sbr.rel (0) target = $region45
    $region44: #{tpu_custom_call.1} parent=1 // pred_region
      _
    $region45: #{tpu_custom_call.1} parent=1 // pred_fallthru
      _
    // Predicated region
    $region46: #{tpu_custom_call.1} parent=1 // pred_check
      _
    $region47: #{tpu_custom_call.1} parent=1 // pred_check_branch
      %87 = sbr.rel (0) target = $region49
    $region48: #{tpu_custom_call.1} parent=1 // pred_region
      %89 = dma.done [#allocation3], 768
    $region49: #{tpu_custom_call.1} parent=1 // pred_fallthru
      _
    // Predicated region
    $region50: #{tpu_custom_call.1} parent=1 // pred_check
      _
    $region51: #{tpu_custom_call.1} parent=1 // pred_check_branch
      %91 = sbr.rel (0) target = $region53
    $region52: #{tpu_custom_call.1} parent=1 // pred_region
      %93 = dma.done [#allocation6], 3072
    $region53: #{tpu_custom_call.1} parent=1 // pred_fallthru
      _
    // Predicated region
    $region54: #{tpu_custom_call.1} parent=1 // pred_check
      _
    $region55: #{tpu_custom_call.1} parent=1 // pred_check_branch
      %95 = sbr.rel (0) target = $region57
    $region56: #{tpu_custom_call.1} parent=1 // pred_region
      %97 = dma.done [#allocation6], 20480
    $region57: #{tpu_custom_call.1} parent=1 // pred_fallthru
      _
    // Predicated region
    $region58: #{tpu_custom_call.1} parent=1 // pred_check
      _
    $region59: #{tpu_custom_call.1} parent=1 // pred_check_branch
      %99 = sbr.rel (0) target = $region61
    $region60: #{tpu_custom_call.1} parent=1 // pred_region
      %101 = dma.done [#allocation9], 2048
    $region61: #{tpu_custom_call.1} parent=1 // pred_fallthru
      _
    %v102 = vld [vmem:[%s0] sm:$0xff]
    %v103 = vld [vmem:[%s0 + $0x8] sm:$0xff]
    %v104 = vld [vmem:[%s0 + $0x10] sm:$0xff]
    %v105 = vld [vmem:[%s0 + $0x18] sm:$0xff]
    %vm110 = vcmask 1046528
    %v111 = vrot.slane %v102, 1
    %v112 = vrot.slane %v103, 1
    %v113 = vsel %vm110, %v111, %v112
    %v114 = vrot.slane %v104, 1
    %v115 = vrot.slane %v105, 1
    %v116 = vsel %vm110, %v114, %v115
    %117 = vrot.lane.b32.xlu0 %v113, 4
    %v118 = vpop.permute.xlu0 %117
    %119 = vrot.lane.b32.xlu0 %v112, 4
    %v120 = vpop.permute.xlu0 %119
    %121 = vrot.lane.b32.xlu0 %v116, 4
    %v122 = vpop.permute.xlu0 %121
    %123 = vrot.lane.b32.xlu0 %v115, 4
    %v124 = vpop.permute.xlu0 %123
    %vm129 = vcmask 1045504
    %v130 = vrot.slane %v102, 2
    %v131 = vrot.slane %v103, 2
    %v132 = vsel %vm129, %v130, %v131
    %v133 = vrot.slane %v104, 2
    %v134 = vrot.slane %v105, 2
    %v135 = vsel %vm129, %v133, %v134
    %136 = vrot.lane.b32.xlu0 %v132, 8
    %v137 = vpop.permute.xlu0 %136
    %138 = vrot.lane.b32.xlu0 %v131, 8
    %v139 = vpop.permute.xlu0 %138
    %140 = vrot.lane.b32.xlu0 %v135, 8
    %v141 = vpop.permute.xlu0 %140
    %142 = vrot.lane.b32.xlu0 %v134, 8
    %v143 = vpop.permute.xlu0 %142
    %vm148 = vcmask 31744
    %v149 = vsel %vm148, %v102, %v118
    %v150 = vsel %vm148, %v103, %v120
    %v151 = vsel %vm148, %v104, %v122
    %v152 = vsel %vm148, %v105, %v124
    %vm153 = vcmask 64512
    %v154 = vsel %vm153, %v149, %v137
    %v155 = vsel %vm153, %v150, %v139
    %v156 = vsel %vm153, %v151, %v141
    %v157 = vsel %vm153, %v152, %v143
    %v162 = vrot.slane %v154, 2
    %v163 = vrot.slane %v154, 4
    %v164 = vrot.slane %v154, 6
    %v165 = vrot.slane %v155, 2
    %v166 = vrot.slane %v155, 4
    %v167 = vrot.slane %v156, 2
    %v168 = vrot.slane %v156, 4
    %v169 = vrot.slane %v156, 6
    %v170 = vrot.slane %v157, 2
    %v171 = vrot.slane %v157, 4
    %v172 = vld [vmem:[%s1] sm:$0xff]
    %v173 = vld [vmem:[%s1 + $0x8] sm:$0xf]
    %v174 = vld [vmem:[%s2] sm:$0x1]
    %v176 = vperm.slane %v174, 0
    %178 = vst [vmem:[#allocation1] ss:$4 sm:$0xff] %v154
    %s179 = scalar_lea.vmem [#allocation1], 1
    %180 = vst [vmem:[%s179] ss:$4 sm:$0xff] %v162
    %s181 = scalar_lea.vmem [#allocation1], 2
    %182 = vst [vmem:[%s181] ss:$4 sm:$0xff] %v163
    %s183 = scalar_lea.vmem [#allocation1], 3
    %184 = vst [vmem:[%s183] ss:$4 sm:$0xff] %v164
    %s185 = scalar_lea.vmem [#allocation1], 32
    %186 = vst [vmem:[%s185] ss:$4 sm:$0xff] %v155
    %s187 = scalar_lea.vmem [#allocation1], 33
    %188 = vst [vmem:[%s187] ss:$4 sm:$0xff] %v165
    %s189 = scalar_lea.vmem [#allocation1], 34
    %190 = vst [vmem:[%s189] ss:$4 sm:$0xff] %v166
    %s191 = scalar_lea.vmem [#allocation1], 35
    %192 = vst [vmem:[%s191] ss:$4 sm:$0xff] %v156
    %v193 = vld.sshfl [vmem:[#allocation1] sm:$0xff pattern:$0x73625140]
    %v194 = vld.sshfl [vmem:[#allocation1 + $0x20] sm:$0xff pattern:$0x73625140]
    %195 = vst [vmem:[#allocation1] ss:$4 sm:$0xff] %v167
    %196 = vst [vmem:[%s179] ss:$4 sm:$0xff] %v168
    %197 = vst [vmem:[%s181] ss:$4 sm:$0xff] %v169
    %198 = vst [vmem:[%s183] ss:$4 sm:$0xff] %v157
    %199 = vst [vmem:[%s185] ss:$4 sm:$0xff] %v170
    %200 = vst [vmem:[%s187] ss:$4 sm:$0xff] %v171
    %v201 = vld.sshfl [vmem:[#allocation1] sm:$0xff pattern:$0x73625140]
    %v202 = vld.sshfl [vmem:[#allocation1 + $0x20] sm:$0xff pattern:$0x73625140]
    %vm203 = vcmask 97280
    %v204 = vsel %vm203, %v193, 0
    %v206 = vsel %vm203, %v194, 0
    %v208 = vsel %vm203, %v201, 0
    %v210 = vsel %vm203, %v202, 0
    %vm212 = vcmask 1043456
    %v214 = vsel %vm212, %v173, 0
    %216 = vmatpush.msra.mxu0 0.0
    %217 = vmatpush.msra.mxu0 0.0
    %218 = vmatpush.msra.mxu0 0.0
    %219 = vmatpush.msra.mxu0 0.0
    %220 = vmatpush.msra.mxu0 0.0
    %221 = vmatpush.msra.mxu0 0.0
    %222 = vmatpush.msra.mxu0 0.0
    %223 = vmatpush.msra.mxu0 0.0
    %224 = vmatpush.msra.mxu0 0.0
    %225 = vmatpush.msra.mxu0 0.0
    %226 = vmatpush.msra.mxu0 0.0
    %227 = vmatpush.msra.mxu0 0.0
    %228 = vmatpush.msra.mxu0 0.0
    %229 = vmatpush.msra.mxu0 0.0
    %230 = vmatpush.msra.mxu0 %v214
    %231 = vmatpush.msra.mxu0 %v172
    %232 = vmatmul.f32.gmra.mxu0 %v204
    %v233 = vpop.f32.mrf.mxu0
    %v234 = vadd.f32 %v176, %v233
    %235 = vmatmul.f32.gmra.mxu0 %v206
    %v236 = vpop.f32.mrf.mxu0
    %v237 = vadd.f32 %v176, %v236
    %238 = vmatmul.f32.gmra.mxu0 %v208
    %v239 = vpop.f32.mrf.mxu0
    %v240 = vadd.f32 %v176, %v239
    %241 = vmatmul.f32.gmra.mxu0 %v210
    %v242 = vpop.f32.mrf.mxu0
    %v243 = vadd.f32 %v176, %v242
    %244 = vdwg.mxu0
    %v245 = vmax.f32 %v234, 0.0
    %v246 = vmax.f32 %v237, 0.0
    %v247 = vmax.f32 %v240, 0.0
    %v248 = vmax.f32 %v243, 0.0
    %v253 = vrot.slane %v245, 2
    %v254 = vrot.slane %v245, 4
    %v255 = vrot.slane %v245, 6
    %v256 = vrot.slane %v246, 2
    %v257 = vrot.slane %v246, 4
    %v258 = vrot.slane %v246, 6
    %v259 = vrot.slane %v247, 2
    %v260 = vrot.slane %v247, 4
    %v261 = vrot.slane %v247, 6
    %v262 = vrot.slane %v248, 2
    %263 = vst [vmem:[#allocation1] ss:$4 sm:$0xff] %v245
    %s264 = scalar_lea.vmem [#allocation1], 1
    %265 = vst [vmem:[%s264] ss:$4 sm:$0xff] %v253
    %s266 = scalar_lea.vmem [#allocation1], 2
    %267 = vst [vmem:[%s266] ss:$4 sm:$0xff] %v254
    %s268 = scalar_lea.vmem [#allocation1], 3
    %269 = vst [vmem:[%s268] ss:$4 sm:$0xff] %v255
    %s270 = scalar_lea.vmem [#allocation1], 32
    %271 = vst [vmem:[%s270] ss:$4 sm:$0xff] %v246
    %s272 = scalar_lea.vmem [#allocation1], 33
    %273 = vst [vmem:[%s272] ss:$4 sm:$0xff] %v256
    %v274 = vld.sshfl [vmem:[#allocation1] sm:$0xff pattern:$0x73625140]
    %v275 = vld.sshfl [vmem:[#allocation1 + $0x20] sm:$0xff pattern:$0x73625140]
    %276 = vst [vmem:[#allocation1] ss:$4 sm:$0xff] %v258
    %277 = vst [vmem:[%s264] ss:$4 sm:$0xff] %v247
    %278 = vst [vmem:[%s266] ss:$4 sm:$0xff] %v259
    %279 = vst [vmem:[%s268] ss:$4 sm:$0xff] %v260
    %280 = vst [vmem:[%s270] ss:$4 sm:$0xff] %v261
    %281 = vst [vmem:[%s272] ss:$4 sm:$0xff] %v248
    %v282 = vld.sshfl [vmem:[#allocation1] sm:$0xff pattern:$0x73625140]
    %v283 = vld.sshfl [vmem:[#allocation1 + $0x20] sm:$0xff pattern:$0x73625140]
    %288 = vst [vmem:[#allocation1] ss:$4 sm:$0xff] %v245
    %s289 = scalar_lea.vmem [#allocation1], 1
    %290 = vst [vmem:[%s289] ss:$4 sm:$0xff] %v253
    %s291 = scalar_lea.vmem [#allocation1], 2
    %292 = vst [vmem:[%s291] ss:$4 sm:$0xff] %v254
    %s293 = scalar_lea.vmem [#allocation1], 3
    %294 = vst [vmem:[%s293] ss:$4 sm:$0xff] %v255
    %s295 = scalar_lea.vmem [#allocation1], 32
    %296 = vst [vmem:[%s295] ss:$4 sm:$0xff] %v246
    %s297 = scalar_lea.vmem [#allocation1], 33
    %298 = vst [vmem:[%s297] ss:$4 sm:$0xff] %v256
    %s299 = scalar_lea.vmem [#allocation1], 34
    %300 = vst [vmem:[%s299] ss:$4 sm:$0xff] %v257
    %v301 = vld.sshfl [vmem:[#allocation1] sm:$0xff pattern:$0x73625140]
    %v302 = vld.sshfl [vmem:[#allocation1 + $0x20] sm:$0xff pattern:$0x73625140]
    %303 = vst [vmem:[#allocation1] ss:$4 sm:$0xff] %v258
    %304 = vst [vmem:[%s289] ss:$4 sm:$0xff] %v247
    %305 = vst [vmem:[%s291] ss:$4 sm:$0xff] %v259
    %306 = vst [vmem:[%s293] ss:$4 sm:$0xff] %v260
    %307 = vst [vmem:[%s295] ss:$4 sm:$0xff] %v261
    %308 = vst [vmem:[%s297] ss:$4 sm:$0xff] %v248
    %309 = vst [vmem:[%s299] ss:$4 sm:$0xff] %v262
    %v310 = vld.sshfl [vmem:[#allocation1] sm:$0xff pattern:$0x73625140]
    %v311 = vld.sshfl [vmem:[#allocation1 + $0x20] sm:$0xff pattern:$0x73625140]
    %v312 = vrot.slane %v301, 1
    %v313 = vrot.slane %v302, 1
    %v314 = vsel %vm110, %v312, %v313
    %v315 = vrot.slane %v310, 1
    %v316 = vrot.slane %v311, 1
    %v317 = vsel %vm110, %v315, %v316
    %318 = vrot.lane.b32.xlu0 %v314, 16
    %v319 = vpop.permute.xlu0 %318
    %320 = vrot.lane.b32.xlu0 %v313, 16
    %v321 = vpop.permute.xlu0 %320
    %322 = vrot.lane.b32.xlu0 %v317, 16
    %v323 = vpop.permute.xlu0 %322
    %324 = vrot.lane.b32.xlu0 %v316, 16
    %v325 = vpop.permute.xlu0 %324
    %330 = vst [vmem:[#allocation1] ss:$4 sm:$0xff] %v253
    %s331 = scalar_lea.vmem [#allocation1], 1
    %332 = vst [vmem:[%s331] ss:$4 sm:$0xff] %v254
    %s333 = scalar_lea.vmem [#allocation1], 2
    %334 = vst [vmem:[%s333] ss:$4 sm:$0xff] %v255
    %s335 = scalar_lea.vmem [#allocation1], 3
    %336 = vst [vmem:[%s335] ss:$4 sm:$0xff] %v246
    %s337 = scalar_lea.vmem [#allocation1], 32
    %338 = vst [vmem:[%s337] ss:$4 sm:$0xff] %v256
    %s339 = scalar_lea.vmem [#allocation1], 33
    %340 = vst [vmem:[%s339] ss:$4 sm:$0xff] %v257
    %v341 = vld.sshfl [vmem:[#allocation1] sm:$0xff pattern:$0x73625140]
    %v342 = vld.sshfl [vmem:[#allocation1 + $0x20] sm:$0xff pattern:$0x73625140]
    %343 = vst [vmem:[#allocation1] ss:$4 sm:$0xff] %v247
    %344 = vst [vmem:[%s331] ss:$4 sm:$0xff] %v259
    %345 = vst [vmem:[%s333] ss:$4 sm:$0xff] %v260
    %346 = vst [vmem:[%s335] ss:$4 sm:$0xff] %v261
    %347 = vst [vmem:[%s337] ss:$4 sm:$0xff] %v248
    %348 = vst [vmem:[%s339] ss:$4 sm:$0xff] %v262
    %v349 = vld.sshfl [vmem:[#allocation1] sm:$0xff pattern:$0x73625140]
    %v350 = vld.sshfl [vmem:[#allocation1 + $0x20] sm:$0xff pattern:$0x73625140]
    %351 = vrot.lane.b32.xlu0 %v341, 32
    %v352 = vpop.permute.xlu0 %351
    %353 = vrot.lane.b32.xlu0 %v342, 32
    %v354 = vpop.permute.xlu0 %353
    %355 = vrot.lane.b32.xlu0 %v349, 32
    %v356 = vpop.permute.xlu0 %355
    %357 = vrot.lane.b32.xlu0 %v350, 32
    %v358 = vpop.permute.xlu0 %357
    %vm363 = vcmask 130048
    %v364 = vsel %vm363, %v274, %v319
    %v365 = vsel %vm363, %v275, %v321
    %v366 = vsel %vm363, %v282, %v323
    %v367 = vsel %vm363, %v283, %v325
    %vm368 = vcmask 261120
    %v369 = vsel %vm368, %v364, %v352
    %v370 = vsel %vm368, %v365, %v354
    %v371 = vsel %vm368, %v366, %v356
    %v372 = vsel %vm368, %v367, %v358
    %v377 = vrot.slane %v369, 4
    %v378 = vrot.slane %v371, 4
    %v379 = vld [vmem:[#allocation2] sm:$0xff]
    %v380 = vld [vmem:[#allocation2 + $0x8] sm:$0xff]
    %v381 = vld [vmem:[#allocation2 + $0x10] sm:$0xff]
    %v382 = vld [vmem:[#allocation2 + $0x18] sm:$0xff]
    %v383 = vld [vmem:[#allocation2 + $0x20] sm:$0xff]
    %v384 = vld [vmem:[#allocation2 + $0x28] sm:$0xff]
    %v385 = vld [vmem:[%s4] sm:$0x1]
    %v387 = vperm.slane %v385, 0
    %389 = vst [vmem:[#allocation1] ss:$2 sm:$0xff] %v369
    %s390 = scalar_lea.vmem [#allocation1], 1
    %391 = vst [vmem:[%s390] ss:$2 sm:$0xff] %v377
    %s392 = scalar_lea.vmem [#allocation1], 16
    %393 = vst [vmem:[%s392] ss:$2 sm:$0xff] %v370
    %s394 = scalar_lea.vmem [#allocation1], 17
    %395 = vst [vmem:[%s394] ss:$2 sm:$0xff] %v371
    %s396 = scalar_lea.vmem [#allocation1], 32
    %397 = vst [vmem:[%s396] ss:$2 sm:$0xff] %v378
    %s398 = scalar_lea.vmem [#allocation1], 33
    %399 = vst [vmem:[%s398] ss:$2 sm:$0xff] %v372
    %v400 = vld.sshfl [vmem:[#allocation1] sm:$0xff pattern:$0x75316420]
    %v401 = vld.sshfl [vmem:[#allocation1 + $0x10] sm:$0xff pattern:$0x75316420]
    %v402 = vld.sshfl [vmem:[#allocation1 + $0x20] sm:$0xff pattern:$0x75316420]
    %vm403 = vcmask 392192
    %v404 = vsel %vm403, %v400, 0
    %v406 = vsel %vm403, %v401, 0
    %v408 = vsel %vm403, %v402, 0
    %410 = vmatpush.msra.mxu0 0.0
    %411 = vmatpush.msra.mxu0 0.0
    %412 = vmatpush.msra.mxu0 0.0
    %413 = vmatpush.msra.mxu0 0.0
    %414 = vmatpush.msra.mxu0 0.0
    %415 = vmatpush.msra.mxu0 0.0
    %416 = vmatpush.msra.mxu0 0.0
    %417 = vmatpush.msra.mxu0 0.0
    %418 = vmatpush.msra.mxu0 0.0
    %419 = vmatpush.msra.mxu0 0.0
    %420 = vmatpush.msra.mxu0 %v384
    %421 = vmatpush.msra.mxu0 %v383
    %422 = vmatpush.msra.mxu0 %v382
    %423 = vmatpush.msra.mxu0 %v381
    %424 = vmatpush.msra.mxu0 %v380
    %425 = vmatpush.msra.mxu0 %v379
    %426 = vmatmul.f32.gmra.mxu0 %v404
    %v427 = vpop.f32.mrf.mxu0
    %v428 = vadd.f32 %v387, %v427
    %429 = vmatmul.f32.gmra.mxu0 %v406
    %v430 = vpop.f32.mrf.mxu0
    %v431 = vadd.f32 %v387, %v430
    %432 = vmatmul.f32.gmra.mxu0 %v408
    %v433 = vpop.f32.mrf.mxu0
    %v434 = vadd.f32 %v387, %v433
    %435 = vdwg.mxu0
    %v436 = vmax.f32 %v428, 0.0
    %v437 = vmax.f32 %v431, 0.0
    %v438 = vmax.f32 %v434, 0.0
    %v442 = vrot.slane %v436, 4
    %v443 = vrot.slane %v437, 4
    %v444 = vrot.slane %v438, 4
    %445 = vst [vmem:[#allocation1] ss:$2 sm:$0xff] %v436
    %s446 = scalar_lea.vmem [#allocation1], 1
    %447 = vst [vmem:[%s446] ss:$2 sm:$0xff] %v442
    %s448 = scalar_lea.vmem [#allocation1], 16
    %449 = vst [vmem:[%s448] ss:$2 sm:$0xff] %v437
    %v450 = vld.sshfl [vmem:[#allocation1] sm:$0xff pattern:$0x75316420]
    %v451 = vld.sshfl [vmem:[#allocation1 + $0x10] sm:$0xff pattern:$0x75316420]
    %s452 = scalar_lea.vmem [#allocation1], 32
    %453 = vst [vmem:[%s452] ss:$2 sm:$0xff] %v443
    %s454 = scalar_lea.vmem [#allocation1], 33
    %455 = vst [vmem:[%s454] ss:$2 sm:$0xff] %v438
    %s456 = scalar_lea.vmem [#allocation1], 48
    %457 = vst [vmem:[%s456] ss:$2 sm:$0xff] %v444
    %v458 = vld.sshfl [vmem:[#allocation1 + $0x20] sm:$0xff pattern:$0x75316420]
    %v459 = vld.sshfl [vmem:[#allocation1 + $0x30] sm:$0xff pattern:$0x75316420]
    %464 = vst [vmem:[#allocation1] ss:$2 sm:$0xff] %v436
    %s465 = scalar_lea.vmem [#allocation1], 1
    %466 = vst [vmem:[%s465] ss:$2 sm:$0xff] %v442
    %s467 = scalar_lea.vmem [#allocation1], 16
    %468 = vst [vmem:[%s467] ss:$2 sm:$0xff] %v437
    %v469 = vld.sshfl [vmem:[#allocation1] sm:$0xff pattern:$0x75316420]
    %v470 = vld.sshfl [vmem:[#allocation1 + $0x10] sm:$0xff pattern:$0x75316420]
    %s471 = scalar_lea.vmem [#allocation1], 32
    %472 = vst [vmem:[%s471] ss:$2 sm:$0xff] %v443
    %s473 = scalar_lea.vmem [#allocation1], 33
    %474 = vst [vmem:[%s473] ss:$2 sm:$0xff] %v438
    %s475 = scalar_lea.vmem [#allocation1], 48
    %476 = vst [vmem:[%s475] ss:$2 sm:$0xff] %v444
    %v477 = vld.sshfl [vmem:[#allocation1 + $0x20] sm:$0xff pattern:$0x75316420]
    %v478 = vld.sshfl [vmem:[#allocation1 + $0x30] sm:$0xff pattern:$0x75316420]
    %v479 = vrot.slane %v469, 1
    %v480 = vrot.slane %v470, 1
    %v481 = vsel %vm110, %v479, %v480
    %v482 = vrot.slane %v477, 1
    %v483 = vrot.slane %v478, 1
    %v484 = vsel %vm110, %v482, %v483
    %485 = vrot.lane.b32.xlu0 %v481, 64
    %v486 = vpop.permute.xlu0 %485
    %487 = vrot.lane.b32.xlu0 %v480, 64
    %v488 = vpop.permute.xlu0 %487
    %489 = vrot.lane.b32.xlu0 %v484, 64
    %v490 = vpop.permute.xlu0 %489
    %491 = vrot.lane.b32.xlu0 %v483, 64
    %v492 = vpop.permute.xlu0 %491
    %497 = vst [vmem:[#allocation1] ss:$2 sm:$0xff] %v436
    %s498 = scalar_lea.vmem [#allocation1], 1
    %499 = vst [vmem:[%s498] ss:$2 sm:$0xff] %v442
    %s500 = scalar_lea.vmem [#allocation1], 16
    %501 = vst [vmem:[%s500] ss:$2 sm:$0xff] %v437
    %v502 = vld.sshfl [vmem:[#allocation1] sm:$0xff pattern:$0x75316420]
    %v503 = vld.sshfl [vmem:[#allocation1 + $0x10] sm:$0xff pattern:$0x75316420]
    %s504 = scalar_lea.vmem [#allocation1], 32
    %505 = vst [vmem:[%s504] ss:$2 sm:$0xff] %v443
    %s506 = scalar_lea.vmem [#allocation1], 33
    %507 = vst [vmem:[%s506] ss:$2 sm:$0xff] %v438
    %s508 = scalar_lea.vmem [#allocation1], 48
    %509 = vst [vmem:[%s508] ss:$2 sm:$0xff] %v444
    %v510 = vld.sshfl [vmem:[#allocation1 + $0x20] sm:$0xff pattern:$0x75316420]
    %v511 = vld.sshfl [vmem:[#allocation1 + $0x30] sm:$0xff pattern:$0x75316420]
    %v512 = vrot.slane %v502, 2
    %v513 = vrot.slane %v503, 2
    %v514 = vsel %vm129, %v512, %v513
    %v515 = vrot.slane %v510, 2
    %v516 = vrot.slane %v511, 2
    %v517 = vsel %vm129, %v515, %v516
    %vm518 = vcmask 523264
    %v519 = vsel %vm518, %v450, %v486
    %v520 = vsel %vm518, %v451, %v488
    %v521 = vsel %vm518, %v458, %v490
    %v522 = vsel %vm518, %v459, %v492
    %v527 = vrot.slane %v514, 6
    %v528 = vrot.slane %v513, 6
    %v529 = vrot.slane %v517, 6
    %v530 = vrot.slane %v516, 6
    %vm531 = vcmask 1041408
    %v532 = vsel %vm531, %v519, %v527
    %vm533 = vcmask 1043458
    %v534 = vsel %vm533, %v519, %v527
    %v535 = vrot.slane %v534, 2
    %vm536 = vcmask 1045508
    %v537 = vsel %vm536, %v519, %v527
    %v538 = vrot.slane %v537, 4
    %v539 = vsel %vm129, %v527, %v519
    %v540 = vrot.slane %v539, 6
    %v541 = vsel %vm531, %v520, %v528
    %v542 = vsel %vm531, %v521, %v529
    %v543 = vsel %vm533, %v521, %v529
    %v544 = vrot.slane %v543, 2
    %v545 = vsel %vm536, %v521, %v529
    %v546 = vrot.slane %v545, 4
    %v547 = vsel %vm129, %v529, %v521
    %v548 = vrot.slane %v547, 6
    %v549 = vsel %vm531, %v522, %v530
    %v550 = vld [vmem:[#allocation5] sm:$0xff]
    %v551 = vld [vmem:[#allocation5 + $0x8] sm:$0xff]
    %v552 = vld [vmem:[#allocation5 + $0x10] sm:$0xff]
    %v553 = vld [vmem:[#allocation5 + $0x18] sm:$0xff]
    %v554 = vld [vmem:[#allocation5 + $0x20] sm:$0xff]
    %v555 = vld [vmem:[#allocation5 + $0x28] sm:$0xff]
    %v556 = vld [vmem:[#allocation5 + $0x30] sm:$0xff]
    %v557 = vld [vmem:[#allocation5 + $0x38] sm:$0xff]
    %v558 = vld [vmem:[#allocation5 + $0x40] sm:$0xff]
    %v559 = vld [vmem:[#allocation5 + $0x48] sm:$0xff]
    %v560 = vld [vmem:[#allocation5 + $0x50] sm:$0xff]
    %v561 = vld [vmem:[#allocation5 + $0x58] sm:$0xff]
    %v562 = vld [vmem:[#allocation5 + $0x60] sm:$0xff]
    %v563 = vld [vmem:[#allocation5 + $0x68] sm:$0xff]
    %v564 = vld [vmem:[#allocation5 + $0x70] sm:$0xff]
    %v565 = vld [vmem:[#allocation5 + $0x78] sm:$0xff]
    %v566 = vld [vmem:[#allocation5 + $0x80] sm:$0xff]
    %v567 = vld [vmem:[#allocation5 + $0x88] sm:$0xff]
    %v568 = vld [vmem:[#allocation5 + $0x90] sm:$0xff]
    %v569 = vld [vmem:[#allocation5 + $0x98] sm:$0xff]
    %v570 = vld [vmem:[#allocation5 + $0xa0] sm:$0xff]
    %v571 = vld [vmem:[#allocation5 + $0xa8] sm:$0xff]
    %v572 = vld [vmem:[#allocation5 + $0xb0] sm:$0xff]
    %v573 = vld [vmem:[#allocation5 + $0xb8] sm:$0xff]
    %v574 = vld [vmem:[%s6] sm:$0x1]
    %v576 = vperm.slane %v574, 0
    %578 = vst [vmem:[#allocation1] ss:$4 sm:$0xff] %v532
    %s579 = scalar_lea.vmem [#allocation1], 1
    %580 = vst [vmem:[%s579] ss:$4 sm:$0xff] %v535
    %s581 = scalar_lea.vmem [#allocation1], 2
    %582 = vst [vmem:[%s581] ss:$4 sm:$0xff] %v538
    %s583 = scalar_lea.vmem [#allocation1], 3
    %584 = vst [vmem:[%s583] ss:$4 sm:$0xff] %v540
    %s585 = scalar_lea.vmem [#allocation1], 32
    %586 = vst [vmem:[%s585] ss:$4 sm:$0xff] %v541
    %s587 = scalar_lea.vmem [#allocation1], 33
    %588 = vst [vmem:[%s587] ss:$4 sm:$0xff] %v542
    %s589 = scalar_lea.vmem [#allocation1], 34
    %590 = vst [vmem:[%s589] ss:$4 sm:$0xff] %v544
    %s591 = scalar_lea.vmem [#allocation1], 35
    %592 = vst [vmem:[%s591] ss:$4 sm:$0xff] %v546
    %v593 = vld.sshfl [vmem:[#allocation1] sm:$0xff pattern:$0x73625140]
    %v594 = vld.sshfl [vmem:[#allocation1 + $0x8] sm:$0xff pattern:$0x73625140]
    %v595 = vld.sshfl [vmem:[#allocation1 + $0x20] sm:$0xff pattern:$0x73625140]
    %v596 = vld.sshfl [vmem:[#allocation1 + $0x28] sm:$0xff pattern:$0x73625140]
    %597 = vst [vmem:[#allocation1] ss:$4 sm:$0xff] %v548
    %598 = vst [vmem:[%s579] ss:$4 sm:$0xff] %v549
    %v599 = vld.sshfl [vmem:[#allocation1] sm:$0xff pattern:$0x73625140]
    %v600 = vld.sshfl [vmem:[#allocation1 + $0x8] sm:$0xff pattern:$0x73625140]
    %v604 = vsel %vm518, %v594, 0
    %v606 = vsel %vm518, %v596, 0
    %v608 = vsel %vm518, %v600, 0
    %610 = vmatpush.msra.mxu0 %v565
    %611 = vmatpush.msra.mxu0 %v564
    %612 = vmatpush.msra.mxu0 %v563
    %613 = vmatpush.msra.mxu0 %v562
    %614 = vmatpush.msra.mxu0 %v561
    %615 = vmatpush.msra.mxu0 %v560
    %616 = vmatpush.msra.mxu0 %v559
    %617 = vmatpush.msra.mxu0 %v558
    %618 = vmatpush.msra.mxu0 %v557
    %619 = vmatpush.msra.mxu0 %v556
    %620 = vmatpush.msra.mxu0 %v555
    %621 = vmatpush.msra.mxu0 %v554
    %622 = vmatpush.msra.mxu0 %v553
    %623 = vmatpush.msra.mxu0 %v552
    %624 = vmatpush.msra.mxu0 %v551
    %625 = vmatpush.msra.mxu0 %v550
    %626 = vmatmul.f32.gmra.mxu0 %v593
    %v627 = vpop.f32.mrf.mxu0
    %v628 = vadd.f32 %v576, %v627
    %629 = vmatmul.f32.gmra.mxu0 %v595
    %v630 = vpop.f32.mrf.mxu0
    %v631 = vadd.f32 %v576, %v630
    %632 = vmatmul.f32.gmra.mxu0 %v599
    %v633 = vpop.f32.mrf.mxu0
    %v634 = vadd.f32 %v576, %v633
    %635 = vdwg.mxu0
    %636 = vmatpush.msra.mxu0 0.0
    %637 = vmatpush.msra.mxu0 0.0
    %638 = vmatpush.msra.mxu0 0.0
    %639 = vmatpush.msra.mxu0 0.0
    %640 = vmatpush.msra.mxu0 0.0
    %641 = vmatpush.msra.mxu0 0.0
    %642 = vmatpush.msra.mxu0 0.0
    %643 = vmatpush.msra.mxu0 0.0
    %644 = vmatpush.msra.mxu0 %v573
    %645 = vmatpush.msra.mxu0 %v572
    %646 = vmatpush.msra.mxu0 %v571
    %647 = vmatpush.msra.mxu0 %v570
    %648 = vmatpush.msra.mxu0 %v569
    %649 = vmatpush.msra.mxu0 %v568
    %650 = vmatpush.msra.mxu0 %v567
    %651 = vmatpush.msra.mxu0 %v566
    %652 = vmatmul.f32.gmra.mxu0 %v604
    %v653 = vpop.f32.mrf.mxu0
    %v654 = vadd.f32 %v628, %v653
    %655 = vmatmul.f32.gmra.mxu0 %v606
    %v656 = vpop.f32.mrf.mxu0
    %v657 = vadd.f32 %v631, %v656
    %658 = vmatmul.f32.gmra.mxu0 %v608
    %v659 = vpop.f32.mrf.mxu0
    %v660 = vadd.f32 %v634, %v659
    %661 = vdwg.mxu0
    %v662 = vmax.f32 %v654, 0.0
    %v663 = vmax.f32 %v657, 0.0
    %v664 = vmax.f32 %v660, 0.0
    %vm665 = vcmask 1040384
    %v666 = vsel %vm665, %v662, 0.0
    %v667 = vrot.slane %v663, 1
    %vm668 = vcmask 1041409
    %v669 = vsel %vm668, %v667, %v666
    %v670 = vrot.slane %v662, 1
    %v671 = vsel %vm665, %v670, 0.0
    %v672 = vrot.slane %v663, 2
    %v673 = vsel %vm668, %v672, %v671
    %v674 = vrot.slane %v662, 2
    %v675 = vsel %vm665, %v674, 0.0
    %v676 = vrot.slane %v663, 3
    %v677 = vsel %vm668, %v676, %v675
    %v678 = vrot.slane %v662, 3
    %v679 = vsel %vm665, %v678, 0.0
    %v680 = vrot.slane %v663, 4
    %v681 = vsel %vm668, %v680, %v679
    %v682 = vrot.slane %v662, 4
    %v683 = vsel %vm665, %v682, 0.0
    %v684 = vrot.slane %v663, 5
    %v685 = vsel %vm668, %v684, %v683
    %v686 = vrot.slane %v662, 5
    %v687 = vsel %vm665, %v686, 0.0
    %v688 = vrot.slane %v663, 6
    %v689 = vsel %vm668, %v688, %v687
    %v690 = vrot.slane %v662, 6
    %v691 = vsel %vm665, %v690, 0.0
    %v692 = vrot.slane %v664, 7
    %v693 = vsel %vm668, %v692, %v691
    %v694 = vrot.slane %v662, 7
    %v695 = vsel %vm665, %v694, 0.0
    %v696 = vsel %vm668, %v664, %v695
    %v697 = vsel %vm665, %v663, 0.0
    %v698 = vrot.slane %v664, 1
    %v699 = vsel %vm668, %v698, %v697
    %v700 = vsel %vm665, %v667, 0.0
    %v701 = vrot.slane %v664, 2
    %v702 = vsel %vm668, %v701, %v700
    %v703 = vld [vmem:[#allocation7] sm:$0xff]
    %v704 = vld [vmem:[#allocation7 + $0x8] sm:$0xff]
    %v705 = vld [vmem:[#allocation7 + $0x10] sm:$0xff]
    %v706 = vld [vmem:[#allocation7 + $0x18] sm:$0xff]
    %v707 = vld [vmem:[#allocation7 + $0x20] sm:$0xff]
    %v708 = vld [vmem:[#allocation7 + $0x28] sm:$0xff]
    %v709 = vld [vmem:[#allocation7 + $0x30] sm:$0xff]
    %v710 = vld [vmem:[#allocation7 + $0x38] sm:$0xff]
    %v711 = vld [vmem:[#allocation7 + $0x40] sm:$0xff]
    %v712 = vld [vmem:[#allocation7 + $0x48] sm:$0xff]
    %v713 = vld [vmem:[#allocation7 + $0x50] sm:$0xff]
    %v714 = vld [vmem:[#allocation7 + $0x58] sm:$0xff]
    %v715 = vld [vmem:[#allocation7 + $0x60] sm:$0xff]
    %v716 = vld [vmem:[#allocation7 + $0x68] sm:$0xff]
    %v717 = vld [vmem:[#allocation7 + $0x70] sm:$0xff]
    %v718 = vld [vmem:[#allocation7 + $0x78] sm:$0xff]
    %v719 = vld [vmem:[#allocation7 + $0x80] sm:$0xff]
    %v720 = vld [vmem:[#allocation7 + $0x88] sm:$0xff]
    %v721 = vld [vmem:[#allocation7 + $0x90] sm:$0xff]
    %v722 = vld [vmem:[#allocation7 + $0x98] sm:$0xff]
    %v723 = vld [vmem:[#allocation7 + $0xa0] sm:$0xff]
    %v724 = vld [vmem:[#allocation7 + $0xa8] sm:$0xff]
    %v725 = vld [vmem:[#allocation7 + $0xb0] sm:$0xff]
    %v726 = vld [vmem:[#allocation7 + $0xb8] sm:$0xff]
    %v727 = vld [vmem:[#allocation7 + $0xc0] sm:$0xff]
    %v728 = vld [vmem:[#allocation7 + $0xc8] sm:$0xff]
    %v729 = vld [vmem:[#allocation7 + $0xd0] sm:$0xff]
    %v730 = vld [vmem:[#allocation7 + $0xd8] sm:$0xff]
    %v731 = vld [vmem:[#allocation7 + $0xe0] sm:$0xff]
    %v732 = vld [vmem:[#allocation7 + $0xe8] sm:$0xff]
    %v733 = vld [vmem:[#allocation7 + $0xf0] sm:$0xff]
    %v734 = vld [vmem:[#allocation7 + $0xf8] sm:$0xff]
    %v735 = vld [vmem:[#allocation7 + $0x100] sm:$0xff]
    %v736 = vld [vmem:[#allocation7 + $0x108] sm:$0xff]
    %v737 = vld [vmem:[#allocation7 + $0x110] sm:$0xff]
    %v738 = vld [vmem:[#allocation7 + $0x118] sm:$0xff]
    %v739 = vld [vmem:[#allocation7 + $0x120] sm:$0xff]
    %v740 = vld [vmem:[#allocation7 + $0x128] sm:$0xff]
    %v741 = vld [vmem:[#allocation7 + $0x130] sm:$0xff]
    %v742 = vld [vmem:[#allocation7 + $0x138] sm:$0xff]
    %v743 = vld [vmem:[#allocation7 + $0x140] sm:$0xff]
    %v744 = vld [vmem:[#allocation7 + $0x148] sm:$0xff]
    %v745 = vld [vmem:[#allocation7 + $0x150] sm:$0xff]
    %v746 = vld [vmem:[#allocation7 + $0x158] sm:$0xff]
    %v747 = vld [vmem:[#allocation7 + $0x160] sm:$0xff]
    %v748 = vld [vmem:[#allocation7 + $0x168] sm:$0xff]
    %v749 = vld [vmem:[#allocation7 + $0x170] sm:$0xff]
    %v750 = vld [vmem:[#allocation7 + $0x178] sm:$0xff]
    %v751 = vld [vmem:[#allocation7 + $0x180] sm:$0xff]
    %v752 = vld [vmem:[#allocation7 + $0x188] sm:$0xff]
    %v753 = vld [vmem:[#allocation7 + $0x190] sm:$0xff]
    %v754 = vld [vmem:[#allocation7 + $0x198] sm:$0xff]
    %v755 = vld [vmem:[#allocation7 + $0x1a0] sm:$0xff]
    %v756 = vld [vmem:[#allocation7 + $0x1a8] sm:$0xff]
    %v757 = vld [vmem:[#allocation7 + $0x1b0] sm:$0xff]
    %v758 = vld [vmem:[#allocation7 + $0x1b8] sm:$0xff]
    %v759 = vld [vmem:[#allocation7 + $0x1c0] sm:$0xff]
    %v760 = vld [vmem:[#allocation7 + $0x1c8] sm:$0xff]
    %v761 = vld [vmem:[#allocation7 + $0x1d0] sm:$0xff]
    %v762 = vld [vmem:[#allocation7 + $0x1d8] sm:$0xff]
    %v763 = vld [vmem:[#allocation7 + $0x1e0] sm:$0xff]
    %v764 = vld [vmem:[#allocation7 + $0x1e8] sm:$0xff]
    %v765 = vld [vmem:[#allocation7 + $0x1f0] sm:$0xff]
    %v766 = vld [vmem:[#allocation7 + $0x1f8] sm:$0xff]
    %v767 = vld [vmem:[#allocation7 + $0x200] sm:$0xff]
    %v768 = vld [vmem:[#allocation7 + $0x208] sm:$0xff]
    %v769 = vld [vmem:[#allocation7 + $0x210] sm:$0xff]
    %v770 = vld [vmem:[#allocation7 + $0x218] sm:$0xff]
    %v771 = vld [vmem:[#allocation7 + $0x220] sm:$0xff]
    %v772 = vld [vmem:[#allocation7 + $0x228] sm:$0xff]
    %v773 = vld [vmem:[#allocation7 + $0x230] sm:$0xff]
    %v774 = vld [vmem:[#allocation7 + $0x238] sm:$0xff]
    %v775 = vld [vmem:[#allocation7 + $0x240] sm:$0xff]
    %v776 = vld [vmem:[#allocation7 + $0x248] sm:$0xff]
    %v777 = vld [vmem:[#allocation7 + $0x250] sm:$0xff]
    %v778 = vld [vmem:[#allocation7 + $0x258] sm:$0xff]
    %v779 = vld [vmem:[#allocation7 + $0x260] sm:$0xff]
    %v780 = vld [vmem:[#allocation7 + $0x268] sm:$0xff]
    %v781 = vld [vmem:[#allocation7 + $0x270] sm:$0xff]
    %v782 = vld [vmem:[#allocation7 + $0x278] sm:$0xff]
    %v783 = vld [vmem:[#allocation7 + $0x280] sm:$0xff]
    %v784 = vld [vmem:[#allocation7 + $0x288] sm:$0xff]
    %v785 = vld [vmem:[#allocation7 + $0x290] sm:$0xff]
    %v786 = vld [vmem:[#allocation7 + $0x298] sm:$0xff]
    %v787 = vld [vmem:[#allocation7 + $0x2a0] sm:$0xff]
    %v788 = vld [vmem:[#allocation7 + $0x2a8] sm:$0xff]
    %v789 = vld [vmem:[#allocation7 + $0x2b0] sm:$0xff]
    %v790 = vld [vmem:[#allocation7 + $0x2b8] sm:$0xff]
    %v791 = vld [vmem:[#allocation7 + $0x2c0] sm:$0xff]
    %v792 = vld [vmem:[#allocation7 + $0x2c8] sm:$0xff]
    %v793 = vld [vmem:[#allocation7 + $0x2d0] sm:$0xff]
    %v794 = vld [vmem:[#allocation7 + $0x2d8] sm:$0xff]
    %v795 = vld [vmem:[#allocation7 + $0x2e0] sm:$0xff]
    %v796 = vld [vmem:[#allocation7 + $0x2e8] sm:$0xff]
    %v797 = vld [vmem:[#allocation7 + $0x2f0] sm:$0xff]
    %v798 = vld [vmem:[#allocation7 + $0x2f8] sm:$0xff]
    %v799 = vld [vmem:[#allocation7 + $0x300] sm:$0xff]
    %v800 = vld [vmem:[#allocation7 + $0x308] sm:$0xff]
    %v801 = vld [vmem:[#allocation7 + $0x310] sm:$0xff]
    %v802 = vld [vmem:[#allocation7 + $0x318] sm:$0xff]
    %v803 = vld [vmem:[#allocation7 + $0x320] sm:$0xff]
    %v804 = vld [vmem:[#allocation7 + $0x328] sm:$0xff]
    %v805 = vld [vmem:[#allocation7 + $0x330] sm:$0xff]
    %v806 = vld [vmem:[#allocation7 + $0x338] sm:$0xff]
    %v807 = vld [vmem:[#allocation7 + $0x340] sm:$0xff]
    %v808 = vld [vmem:[#allocation7 + $0x348] sm:$0xff]
    %v809 = vld [vmem:[#allocation7 + $0x350] sm:$0xff]
    %v810 = vld [vmem:[#allocation7 + $0x358] sm:$0xff]
    %v811 = vld [vmem:[#allocation7 + $0x360] sm:$0xff]
    %v812 = vld [vmem:[#allocation7 + $0x368] sm:$0xff]
    %v813 = vld [vmem:[#allocation7 + $0x370] sm:$0xff]
    %v814 = vld [vmem:[#allocation7 + $0x378] sm:$0xff]
    %v815 = vld [vmem:[#allocation7 + $0x380] sm:$0xff]
    %v816 = vld [vmem:[#allocation7 + $0x388] sm:$0xff]
    %v817 = vld [vmem:[#allocation7 + $0x390] sm:$0xff]
    %v818 = vld [vmem:[#allocation7 + $0x398] sm:$0xff]
    %v819 = vld [vmem:[#allocation7 + $0x3a0] sm:$0xff]
    %v820 = vld [vmem:[#allocation7 + $0x3a8] sm:$0xff]
    %v821 = vld [vmem:[#allocation7 + $0x3b0] sm:$0xff]
    %v822 = vld [vmem:[#allocation7 + $0x3b8] sm:$0xff]
    %v823 = vld [vmem:[#allocation7 + $0x3c0] sm:$0xff]
    %v824 = vld [vmem:[#allocation7 + $0x3c8] sm:$0xff]
    %v825 = vld [vmem:[#allocation7 + $0x3d0] sm:$0xff]
    %v826 = vld [vmem:[#allocation7 + $0x3d8] sm:$0xff]
    %v827 = vld [vmem:[#allocation7 + $0x3e0] sm:$0xff]
    %v828 = vld [vmem:[#allocation7 + $0x3e8] sm:$0xff]
    %v829 = vld [vmem:[#allocation7 + $0x3f0] sm:$0xff]
    %v830 = vld [vmem:[#allocation7 + $0x3f8] sm:$0xff]
    %v831 = vld [vmem:[#allocation7 + $0x400] sm:$0xff]
    %v832 = vld [vmem:[#allocation7 + $0x408] sm:$0xff]
    %v833 = vld [vmem:[#allocation7 + $0x410] sm:$0xff]
    %v834 = vld [vmem:[#allocation7 + $0x418] sm:$0xff]
    %v835 = vld [vmem:[#allocation7 + $0x420] sm:$0xff]
    %v836 = vld [vmem:[#allocation7 + $0x428] sm:$0xff]
    %v837 = vld [vmem:[#allocation7 + $0x430] sm:$0xff]
    %v838 = vld [vmem:[#allocation7 + $0x438] sm:$0xff]
    %v839 = vld [vmem:[#allocation7 + $0x440] sm:$0xff]
    %v840 = vld [vmem:[#allocation7 + $0x448] sm:$0xff]
    %v841 = vld [vmem:[#allocation7 + $0x450] sm:$0xff]
    %v842 = vld [vmem:[#allocation7 + $0x458] sm:$0xff]
    %v843 = vld [vmem:[#allocation7 + $0x460] sm:$0xff]
    %v844 = vld [vmem:[#allocation7 + $0x468] sm:$0xff]
    %v845 = vld [vmem:[#allocation7 + $0x470] sm:$0xff]
    %v846 = vld [vmem:[#allocation7 + $0x478] sm:$0xff]
    %v847 = vld [vmem:[#allocation7 + $0x480] sm:$0xff]
    %v848 = vld [vmem:[#allocation7 + $0x488] sm:$0xff]
    %v849 = vld [vmem:[#allocation7 + $0x490] sm:$0xff]
    %v850 = vld [vmem:[#allocation7 + $0x498] sm:$0xff]
    %v851 = vld [vmem:[#allocation7 + $0x4a0] sm:$0xff]
    %v852 = vld [vmem:[#allocation7 + $0x4a8] sm:$0xff]
    %v853 = vld [vmem:[#allocation7 + $0x4b0] sm:$0xff]
    %v854 = vld [vmem:[#allocation7 + $0x4b8] sm:$0xff]
    %v855 = vld [vmem:[#allocation7 + $0x4c0] sm:$0xff]
    %v856 = vld [vmem:[#allocation7 + $0x4c8] sm:$0xff]
    %v857 = vld [vmem:[#allocation7 + $0x4d0] sm:$0xff]
    %v858 = vld [vmem:[#allocation7 + $0x4d8] sm:$0xff]
    %v859 = vld [vmem:[#allocation7 + $0x4e0] sm:$0xff]
    %v860 = vld [vmem:[#allocation7 + $0x4e8] sm:$0xff]
    %v861 = vld [vmem:[#allocation7 + $0x4f0] sm:$0xff]
    %v862 = vld [vmem:[#allocation7 + $0x4f8] sm:$0xff]
    %v863 = vld [vmem:[%s8] sm:$0x1]
    %v865 = vperm.slane %v863, 0
    %867 = vmatpush.msra.mxu0 %v718
    %868 = vmatpush.msra.mxu0 %v717
    %869 = vmatpush.msra.mxu0 %v716
    %870 = vmatpush.msra.mxu0 %v715
    %871 = vmatpush.msra.mxu0 %v714
    %872 = vmatpush.msra.mxu0 %v713
    %873 = vmatpush.msra.mxu0 %v712
    %874 = vmatpush.msra.mxu0 %v711
    %875 = vmatpush.msra.mxu0 %v710
    %876 = vmatpush.msra.mxu0 %v709
    %877 = vmatpush.msra.mxu0 %v708
    %878 = vmatpush.msra.mxu0 %v707
    %879 = vmatpush.msra.mxu0 %v706
    %880 = vmatpush.msra.mxu0 %v705
    %881 = vmatpush.msra.mxu0 %v704
    %882 = vmatpush.msra.mxu0 %v703
    %883 = vmatmul.f32.gmra.mxu0 %v669
    %v884 = vpop.f32.mrf.mxu0
    %v885 = vadd.f32 %v865, %v884
    %886 = vdwg.mxu0
    %887 = vmatpush.msra.mxu0 %v734
    %888 = vmatpush.msra.mxu0 %v733
    %889 = vmatpush.msra.mxu0 %v732
    %890 = vmatpush.msra.mxu0 %v731
    %891 = vmatpush.msra.mxu0 %v730
    %892 = vmatpush.msra.mxu0 %v729
    %893 = vmatpush.msra.mxu0 %v728
    %894 = vmatpush.msra.mxu0 %v727
    %895 = vmatpush.msra.mxu0 %v726
    %896 = vmatpush.msra.mxu0 %v725
    %897 = vmatpush.msra.mxu0 %v724
    %898 = vmatpush.msra.mxu0 %v723
    %899 = vmatpush.msra.mxu0 %v722
    %900 = vmatpush.msra.mxu0 %v721
    %901 = vmatpush.msra.mxu0 %v720
    %902 = vmatpush.msra.mxu0 %v719
    %903 = vmatmul.f32.gmra.mxu0 %v673
    %v904 = vpop.f32.mrf.mxu0
    %v905 = vadd.f32 %v885, %v904
    %906 = vdwg.mxu0
    %907 = vmatpush.msra.mxu0 %v750
    %908 = vmatpush.msra.mxu0 %v749
    %909 = vmatpush.msra.mxu0 %v748
    %910 = vmatpush.msra.mxu0 %v747
    %911 = vmatpush.msra.mxu0 %v746
    %912 = vmatpush.msra.mxu0 %v745
    %913 = vmatpush.msra.mxu0 %v744
    %914 = vmatpush.msra.mxu0 %v743
    %915 = vmatpush.msra.mxu0 %v742
    %916 = vmatpush.msra.mxu0 %v741
    %917 = vmatpush.msra.mxu0 %v740
    %918 = vmatpush.msra.mxu0 %v739
    %919 = vmatpush.msra.mxu0 %v738
    %920 = vmatpush.msra.mxu0 %v737
    %921 = vmatpush.msra.mxu0 %v736
    %922 = vmatpush.msra.mxu0 %v735
    %923 = vmatmul.f32.gmra.mxu0 %v677
    %v924 = vpop.f32.mrf.mxu0
    %v925 = vadd.f32 %v905, %v924
    %926 = vdwg.mxu0
    %927 = vmatpush.msra.mxu0 %v766
    %928 = vmatpush.msra.mxu0 %v765
    %929 = vmatpush.msra.mxu0 %v764
    %930 = vmatpush.msra.mxu0 %v763
    %931 = vmatpush.msra.mxu0 %v762
    %932 = vmatpush.msra.mxu0 %v761
    %933 = vmatpush.msra.mxu0 %v760
    %934 = vmatpush.msra.mxu0 %v759
    %935 = vmatpush.msra.mxu0 %v758
    %936 = vmatpush.msra.mxu0 %v757
    %937 = vmatpush.msra.mxu0 %v756
    %938 = vmatpush.msra.mxu0 %v755
    %939 = vmatpush.msra.mxu0 %v754
    %940 = vmatpush.msra.mxu0 %v753
    %941 = vmatpush.msra.mxu0 %v752
    %942 = vmatpush.msra.mxu0 %v751
    %943 = vmatmul.f32.gmra.mxu0 %v681
    %v944 = vpop.f32.mrf.mxu0
    %v945 = vadd.f32 %v925, %v944
    %946 = vdwg.mxu0
    %947 = vmatpush.msra.mxu0 %v782
    %948 = vmatpush.msra.mxu0 %v781
    %949 = vmatpush.msra.mxu0 %v780
    %950 = vmatpush.msra.mxu0 %v779
    %951 = vmatpush.msra.mxu0 %v778
    %952 = vmatpush.msra.mxu0 %v777
    %953 = vmatpush.msra.mxu0 %v776
    %954 = vmatpush.msra.mxu0 %v775
    %955 = vmatpush.msra.mxu0 %v774
    %956 = vmatpush.msra.mxu0 %v773
    %957 = vmatpush.msra.mxu0 %v772
    %958 = vmatpush.msra.mxu0 %v771
    %959 = vmatpush.msra.mxu0 %v770
    %960 = vmatpush.msra.mxu0 %v769
    %961 = vmatpush.msra.mxu0 %v768
    %962 = vmatpush.msra.mxu0 %v767
    %963 = vmatmul.f32.gmra.mxu0 %v685
    %v964 = vpop.f32.mrf.mxu0
    %v965 = vadd.f32 %v945, %v964
    %966 = vdwg.mxu0
    %967 = vmatpush.msra.mxu0 %v798
    %968 = vmatpush.msra.mxu0 %v797
    %969 = vmatpush.msra.mxu0 %v796
    %970 = vmatpush.msra.mxu0 %v795
    %971 = vmatpush.msra.mxu0 %v794
    %972 = vmatpush.msra.mxu0 %v793
    %973 = vmatpush.msra.mxu0 %v792
    %974 = vmatpush.msra.mxu0 %v791
    %975 = vmatpush.msra.mxu0 %v790
    %976 = vmatpush.msra.mxu0 %v789
    %977 = vmatpush.msra.mxu0 %v788
    %978 = vmatpush.msra.mxu0 %v787
    %979 = vmatpush.msra.mxu0 %v786
    %980 = vmatpush.msra.mxu0 %v785
    %981 = vmatpush.msra.mxu0 %v784
    %982 = vmatpush.msra.mxu0 %v783
    %983 = vmatmul.f32.gmra.mxu0 %v689
    %v984 = vpop.f32.mrf.mxu0
    %v985 = vadd.f32 %v965, %v984
    %986 = vdwg.mxu0
    %987 = vmatpush.msra.mxu0 %v814
    %988 = vmatpush.msra.mxu0 %v813
    %989 = vmatpush.msra.mxu0 %v812
    %990 = vmatpush.msra.mxu0 %v811
    %991 = vmatpush.msra.mxu0 %v810
    %992 = vmatpush.msra.mxu0 %v809
    %993 = vmatpush.msra.mxu0 %v808
    %994 = vmatpush.msra.mxu0 %v807
    %995 = vmatpush.msra.mxu0 %v806
    %996 = vmatpush.msra.mxu0 %v805
    %997 = vmatpush.msra.mxu0 %v804
    %998 = vmatpush.msra.mxu0 %v803
    %999 = vmatpush.msra.mxu0 %v802
    %1000 = vmatpush.msra.mxu0 %v801
    %1001 = vmatpush.msra.mxu0 %v800
    %1002 = vmatpush.msra.mxu0 %v799
    %1003 = vmatmul.f32.gmra.mxu0 %v693
    %v1004 = vpop.f32.mrf.mxu0
    %v1005 = vadd.f32 %v985, %v1004
    %1006 = vdwg.mxu0
    %1007 = vmatpush.msra.mxu0 %v830
    %1008 = vmatpush.msra.mxu0 %v829
    %1009 = vmatpush.msra.mxu0 %v828
    %1010 = vmatpush.msra.mxu0 %v827
    %1011 = vmatpush.msra.mxu0 %v826
    %1012 = vmatpush.msra.mxu0 %v825
    %1013 = vmatpush.msra.mxu0 %v824
    %1014 = vmatpush.msra.mxu0 %v823
    %1015 = vmatpush.msra.mxu0 %v822
    %1016 = vmatpush.msra.mxu0 %v821
    %1017 = vmatpush.msra.mxu0 %v820
    %1018 = vmatpush.msra.mxu0 %v819
    %1019 = vmatpush.msra.mxu0 %v818
    %1020 = vmatpush.msra.mxu0 %v817
    %1021 = vmatpush.msra.mxu0 %v816
    %1022 = vmatpush.msra.mxu0 %v815
    %1023 = vmatmul.f32.gmra.mxu0 %v696
    %v1024 = vpop.f32.mrf.mxu0
    %v1025 = vadd.f32 %v1005, %v1024
    %1026 = vdwg.mxu0
    %1027 = vmatpush.msra.mxu0 %v846
    %1028 = vmatpush.msra.mxu0 %v845
    %1029 = vmatpush.msra.mxu0 %v844
    %1030 = vmatpush.msra.mxu0 %v843
    %1031 = vmatpush.msra.mxu0 %v842
    %1032 = vmatpush.msra.mxu0 %v841
    %1033 = vmatpush.msra.mxu0 %v840
    %1034 = vmatpush.msra.mxu0 %v839
    %1035 = vmatpush.msra.mxu0 %v838
    %1036 = vmatpush.msra.mxu0 %v837
    %1037 = vmatpush.msra.mxu0 %v836
    %1038 = vmatpush.msra.mxu0 %v835
    %1039 = vmatpush.msra.mxu0 %v834
    %1040 = vmatpush.msra.mxu0 %v833
    %1041 = vmatpush.msra.mxu0 %v832
    %1042 = vmatpush.msra.mxu0 %v831
    %1043 = vmatmul.f32.gmra.mxu0 %v699
    %v1044 = vpop.f32.mrf.mxu0
    %v1045 = vadd.f32 %v1025, %v1044
    %1046 = vdwg.mxu0
    %1047 = vmatpush.msra.mxu0 %v862
    %1048 = vmatpush.msra.mxu0 %v861
    %1049 = vmatpush.msra.mxu0 %v860
    %1050 = vmatpush.msra.mxu0 %v859
    %1051 = vmatpush.msra.mxu0 %v858
    %1052 = vmatpush.msra.mxu0 %v857
    %1053 = vmatpush.msra.mxu0 %v856
    %1054 = vmatpush.msra.mxu0 %v855
    %1055 = vmatpush.msra.mxu0 %v854
    %1056 = vmatpush.msra.mxu0 %v853
    %1057 = vmatpush.msra.mxu0 %v852
    %1058 = vmatpush.msra.mxu0 %v851
    %1059 = vmatpush.msra.mxu0 %v850
    %1060 = vmatpush.msra.mxu0 %v849
    %1061 = vmatpush.msra.mxu0 %v848
    %1062 = vmatpush.msra.mxu0 %v847
    %1063 = vmatmul.f32.gmra.mxu0 %v702
    %v1064 = vpop.f32.mrf.mxu0
    %v1065 = vadd.f32 %v1045, %v1064
    %1066 = vdwg.mxu0
    %v1067 = vmax.f32 %v1065, 0.0
    %v1068 = vld [vmem:[#allocation8] sm:$0xff]
    %v1069 = vld [vmem:[#allocation8 + $0x8] sm:$0xff]
    %v1070 = vld [vmem:[#allocation8 + $0x10] sm:$0xff]
    %v1071 = vld [vmem:[#allocation8 + $0x18] sm:$0xff]
    %v1072 = vld [vmem:[#allocation8 + $0x20] sm:$0xff]
    %v1073 = vld [vmem:[#allocation8 + $0x28] sm:$0xff]
    %v1074 = vld [vmem:[#allocation8 + $0x30] sm:$0xff]
    %v1075 = vld [vmem:[#allocation8 + $0x38] sm:$0xff]
    %v1076 = vld [vmem:[#allocation8 + $0x40] sm:$0xff]
    %v1077 = vld [vmem:[#allocation8 + $0x48] sm:$0xff]
    %v1078 = vld [vmem:[#allocation8 + $0x50] sm:$0xff]
    %v1079 = vld [vmem:[#allocation8 + $0x58] sm:$0xff]
    %v1080 = vld [vmem:[#allocation8 + $0x60] sm:$0xff]
    %v1081 = vld [vmem:[#allocation8 + $0x68] sm:$0xff]
    %v1082 = vld [vmem:[#allocation8 + $0x70] sm:$0xff]
    %v1083 = vld [vmem:[#allocation8 + $0x78] sm:$0xff]
    %v1084 = vld [vmem:[%s10] sm:$0x1]
    %v1086 = vperm.slane %v1084, 0
    %1088 = vmatpush.msra.mxu0 %v1083
    %1089 = vmatpush.msra.mxu0 %v1082
    %1090 = vmatpush.msra.mxu0 %v1081
    %1091 = vmatpush.msra.mxu0 %v1080
    %1092 = vmatpush.msra.mxu0 %v1079
    %1093 = vmatpush.msra.mxu0 %v1078
    %1094 = vmatpush.msra.mxu0 %v1077
    %1095 = vmatpush.msra.mxu0 %v1076
    %1096 = vmatpush.msra.mxu0 %v1075
    %1097 = vmatpush.msra.mxu0 %v1074
    %1098 = vmatpush.msra.mxu0 %v1073
    %1099 = vmatpush.msra.mxu0 %v1072
    %1100 = vmatpush.msra.mxu0 %v1071
    %1101 = vmatpush.msra.mxu0 %v1070
    %1102 = vmatpush.msra.mxu0 %v1069
    %1103 = vmatpush.msra.mxu0 %v1068
    %1104 = vmatmul.f32.gmra.mxu0 %v1067
    %v1105 = vpop.f32.mrf.mxu0
    %v1106 = vadd.f32 %v1086, %v1105
    %1107 = vdwg.mxu0
    %1108 = vst [vmem:[#allocation10] sm:$0x3] %v1106
    // Predicated region
    $region62: #{tpu_custom_call.1} parent=1 // pred_check
      _
    $region63: #{tpu_custom_call.1} parent=1 // pred_check_branch
      %1110 = sbr.rel (0) target = $region65
    $region64: #{tpu_custom_call.1} parent=1 // pred_region
      %1112 = vsyncadd [#allocation4], 0
      %s1114 = sshll.u32 [#allocation10], 4
      %s1115 = int_to_ptr.vmem [resolvable:$true] %s1114
      %s1116 = sshll.u32 %s11, 4
      %s1117 = int_to_ptr.hbm [resolvable:$true] %s1116
      %1119 = dma.vmem_to_hbm [thread:$0]  %s1115, 32, %s1117, [#allocation4]
    $region65: #{tpu_custom_call.1} parent=1 // pred_fallthru
      _
    // Predicated region
    $region66: #{tpu_custom_call.1} parent=1 // pred_check
      _
    $region67: #{tpu_custom_call.1} parent=1 // pred_check_branch
      %1121 = sbr.rel (0) target = $region69
    $region68: #{tpu_custom_call.1} parent=1 // pred_region
      %1123 = dma.done [#allocation4], 32
    $region69: #{tpu_custom_call.1} parent=1 // pred_fallthru
      _
    %1124 = vsyncpa [#allocation3], 1
    %1125 = vsyncpa [#allocation6], 1
    %1126 = vsyncpa [#allocation9], 1
    %1127 = vsyncpa [#allocation4], 1

</llo_original>
